<compile_context>
chip_gen: v6e
topology: v6e:2x2x1
jax: 0.10.0
libtpu: 0.0.40
codegen_flags: <defaults>
</compile_context>

<pallas_src>
import numpy as np
import jax
import jax.numpy as jnp
from jax.experimental import pallas as pl
from jax.experimental.pallas import tpu as pltpu

# ----- problem sizes (from the module) ---------------------------------------
N_BATCH = 2
OUT_SIZE = 4                       # out_size is a ctor arg; pick a small value
IMG_C, IMG_H, IMG_W = 3, 32, 32
KSZ = 4                            # conv kernel
CONV_OUT = 16
OH = OW = IMG_H - KSZ + 1          # 29 (valid conv, stride 1)
PH = PW = OH // 2                  # 14 (maxpool 2,2 -> floor)
POOL_S = PH * PW                   # 196 pooled spatial positions
POOL_PAD = 256                     # lane-padded spatial size (multiple of 128)
KFEAT = IMG_C * KSZ * KSZ          # 48 im2col features
FC_IN = CONV_OUT * POOL_S          # 3136
IN_SIZE = IMG_C * IMG_H * IMG_W    # 3072 (what forward() actually consumes)


# ----- the single fused kernel (one grid step == one sample) ------------------
def _fused_forward_kernel(x_ref, pt_ref, wc_ref, wcs_ref, bc_ref,
                          w1_ref, b1_ref, w2_ref, b2_ref, w3_ref, b3_ref,
                          o_ref):
    # x_ref : (nb, 3072)          raw input (for the global mean/std)
    # pt_ref: (48, 4*256)         this sample's raw im2col patches, corner-major lanes
    # wc_ref: (16, 48)  wcs_ref: (16, 1) rowsum(wc)  bc_ref: (16, 1)
    # w1_ref: (16, 32, 256)       fc1 weight per conv channel, zero-padded lanes
    # w2_ref: (16, 32)  w3_ref: (out, 16)   (torch [out, in] layout)
    # o_ref : (1, out, 1)

    # --- one-pass global normalization statistics (unbiased, matches torch.std) ---
    x = x_ref[...]
    n_el = x.size
    s1 = jnp.sum(x)
    s2 = jnp.sum(x * x)
    mean = s1 / n_el
    var = (s2 - s1 * mean) / (n_el - 1)
    inv_std = jax.lax.rsqrt(var)

    # --- conv(3->16,k=4) at the 4 corners of every 2x2 pool window: ONE wide matmul
    r = jnp.dot(wc_ref[...], pt_ref[...],
                preferred_element_type=jnp.float32)            # (16, 4*256)
    S = POOL_PAD
    rm = jnp.maximum(jnp.maximum(r[:, 0 * S:1 * S], r[:, 1 * S:2 * S]),
                     jnp.maximum(r[:, 2 * S:3 * S], r[:, 3 * S:4 * S]))  # (16, 256)

    # normalization folded into a post-matmul affine (inv_std > 0 so it commutes
    # with the corner max); per-channel bias + ReLU also commute with the max-pool.
    beta = bc_ref[...] - mean * inv_std * wcs_ref[...]          # (16, 1)
    pooled = jnp.maximum(inv_std * rm + beta, 0.0)              # (16, 256)
    # (padded lanes 196..255 hold relu(beta) garbage; w1's zero-padded lanes mask it)

    # --- fc1: contract over (channel, spatial).  16 INDEPENDENT sublane-broadcast
    #     multiply + lane-reduce partials, combined with a log-depth tree (no serial
    #     accumulator chain); avoids any in-kernel flatten/transpose of pooled.
    parts = [jnp.sum(w1_ref[c] * pooled[c:c + 1, :], axis=-1, keepdims=True)
             for c in range(CONV_OUT)]                          # 16 x (32, 1)
    while len(parts) > 1:
        parts = [parts[i] + parts[i + 1] for i in range(0, len(parts), 2)]
    h1 = jnp.maximum(parts[0] + b1_ref[...], 0.0)               # (32, 1)

    h2 = jnp.maximum(
        jnp.dot(w2_ref[...], h1, preferred_element_type=jnp.float32)
        + b2_ref[...], 0.0)                                     # (16, 1)
    out = jnp.dot(w3_ref[...], h2,
                  preferred_element_type=jnp.float32) + b3_ref[...]   # (out, 1)
    o_ref[0] = out


# ----- forward wrapper --------------------------------------------------------
def neuralnet_forward(x, prepped):
    nb = x.shape[0]
    out_size = prepped["w3"].shape[0]

    # ---- layout-only glue on the RAW (un-normalized) input --------------------
    # im2col restricted to the 2x2-pool corner positions, built in a single pass per
    # corner (verified ordering: feature k = c*16 + di*4 + dj matches conv_w.reshape).
    xi = x.reshape(nb, IMG_C, IMG_H, IMG_W)                     # NCHW like torch
    corners = []
    for a in range(2):
        for b in range(2):
            taps = [xi[:, :, a + di:a + di + 2 * PH:2, b + dj:b + dj + 2 * PW:2]
                    for di in range(KSZ) for dj in range(KSZ)]  # 16 x (nb,3,14,14)
            corners.append(jnp.stack(taps, axis=2).reshape(nb, KFEAT, POOL_S))
    pt = jnp.stack(corners, axis=0)                             # (4, nb, 48, 196)
    pt = jnp.pad(pt, ((0, 0), (0, 0), (0, 0), (0, POOL_PAD - POOL_S)))
    # lanes per sample: corner-major [ab*256 + s]; one (48, 1024) block per sample
    pt = pt.transpose(2, 1, 0, 3).reshape(KFEAT, nb * 4 * POOL_PAD)   # (48, nb*1024)

    out3 = pl.pallas_call(
        _fused_forward_kernel,
        out_shape=jax.ShapeDtypeStruct((nb, out_size, 1), jnp.float32),
        grid=(nb,),
        in_specs=[
            pl.BlockSpec((nb, IN_SIZE), lambda n: (0, 0)),             # x (stats)
            pl.BlockSpec((KFEAT, 4 * POOL_PAD), lambda n: (0, n)),     # per-sample pt
            pl.BlockSpec((CONV_OUT, KFEAT), lambda n: (0, 0)),         # wc
            pl.BlockSpec((CONV_OUT, 1), lambda n: (0, 0)),             # rowsum(wc)
            pl.BlockSpec((CONV_OUT, 1), lambda n: (0, 0)),             # bc
            pl.BlockSpec((CONV_OUT, 32, POOL_PAD), lambda n: (0, 0, 0)),  # w1
            pl.BlockSpec((32, 1), lambda n: (0, 0)),                   # b1
            pl.BlockSpec((16, 32), lambda n: (0, 0)),                  # w2
            pl.BlockSpec((16, 1), lambda n: (0, 0)),                   # b2
            pl.BlockSpec((out_size, 16), lambda n: (0, 0)),            # w3
            pl.BlockSpec((out_size, 1), lambda n: (0, 0)),             # b3
        ],
        out_specs=pl.BlockSpec((1, out_size, 1), lambda n: (n, 0, 0)),
        compiler_params=pltpu.CompilerParams(
            dimension_semantics=("parallel",)),   # both TCs on v7x; pipelined elsewhere
    )(x, pt, prepped["wc"], prepped["wcs"], prepped["bc"],
      prepped["w1"], prepped["b1"], prepped["w2"], prepped["b2"],
      prepped["w3"], prepped["b3"])

    return out3.reshape(nb, out_size)                           # free reshape


# ----- one-time parameter re-layout (kept OUT of the per-call forward path) ---
def prepare_params(params):
    wc = params["conv_w"].reshape(CONV_OUT, KFEAT)              # (16, 48)
    w1 = params["fc1_w"].reshape(32, CONV_OUT, POOL_S).transpose(1, 0, 2)  # (16,32,196)
    w1 = jnp.pad(w1, ((0, 0), (0, 0), (0, POOL_PAD - POOL_S)))  # zero-pad lanes -> 256
    return {
        "wc": wc,
        "wcs": jnp.sum(wc, axis=1, keepdims=True),              # rowsum for norm fold
        "bc": params["conv_b"].reshape(CONV_OUT, 1),
        "w1": w1,
        "b1": params["fc1_b"].reshape(32, 1),
        "w2": params["fc2_w"],                                  # (16, 32)
        "b2": params["fc2_b"].reshape(16, 1),
        "w3": params["fc3_w"],                                  # (out, 16)
        "b3": params["fc3_b"].reshape(-1, 1),
    }


# ----- deterministic parameter init (PyTorch-style uniform fan-in bounds) ------
def make_params(key):
    ks = jax.random.split(key, 8)

    def u(k, shape, fan_in):
        bound = 1.0 / float(np.sqrt(fan_in))
        return jax.random.uniform(k, shape, jnp.float32, -bound, bound)

    return {
        # torch-native layouts: conv (O,C,KH,KW), linear (out, in)
        "conv_w": u(ks[0], (CONV_OUT, IMG_C, KSZ, KSZ), IMG_C * KSZ * KSZ),
        "conv_b": u(ks[1], (CONV_OUT,), IMG_C * KSZ * KSZ),
        "fc1_w": u(ks[2], (32, FC_IN), FC_IN),
        "fc1_b": u(ks[3], (32,), FC_IN),
        "fc2_w": u(ks[4], (16, 32), 32),
        "fc2_b": u(ks[5], (16,), 32),
        "fc3_w": u(ks[6], (OUT_SIZE, 16), 16),
        "fc3_b": u(ks[7], (OUT_SIZE,), 16),
    }


if __name__ == "__main__":
    key = jax.random.PRNGKey(0)
    pkey, xkey = jax.random.split(key)
    params = make_params(pkey)
    prepped = prepare_params(params)          # one-time weight re-layout
    # forward() reshapes to (-1, 3, 32, 32), so each sample carries 3072 features
    x = jax.random.normal(xkey, (N_BATCH, IN_SIZE), jnp.float32)

    fwd = jax.jit(neuralnet_forward)
    out = jax.block_until_ready(fwd(x, prepped))
    assert out.shape == (N_BATCH, OUT_SIZE) and out.dtype == jnp.float32
    print("KERNEL_OK")
</pallas_src>

<mosaic_0001>
module attributes {stable_mosaic.version = 11 : i64} {
  func.func @_fused_forward_kernel(%arg0: i32, %arg1: memref<2x3072xf32, #tpu.memory_space<vmem>>, %arg2: memref<48x1024xf32, #tpu.memory_space<vmem>>, %arg3: memref<16x48xf32, #tpu.memory_space<vmem>>, %arg4: memref<16x1xf32, #tpu.memory_space<vmem>>, %arg5: memref<16x1xf32, #tpu.memory_space<vmem>>, %arg6: memref<16x32x256xf32, #tpu.memory_space<vmem>>, %arg7: memref<32x1xf32, #tpu.memory_space<vmem>>, %arg8: memref<16x32xf32, #tpu.memory_space<vmem>>, %arg9: memref<16x1xf32, #tpu.memory_space<vmem>>, %arg10: memref<4x16xf32, #tpu.memory_space<vmem>>, %arg11: memref<4x1xf32, #tpu.memory_space<vmem>>, %arg12: memref<1x4x1xf32, #tpu.memory_space<vmem>>) attributes {dimension_semantics = [#tpu.dimension_semantics<parallel>], iteration_bounds = array<i64: 2>, scalar_prefetch = 0 : i64, scratch_operands = 0 : i64, tpu.core_type = #tpu.core_type<tc>, window_params = [{pipeline_mode = #tpu.pipeline_mode<synchronous>, transform_indices = @transform_0, window_bounds = array<i64: 2, 3072>}, {transform_indices = @transform_1, window_bounds = array<i64: 48, 1024>}, {pipeline_mode = #tpu.pipeline_mode<synchronous>, transform_indices = @transform_2, window_bounds = array<i64: 16, 48>}, {pipeline_mode = #tpu.pipeline_mode<synchronous>, transform_indices = @transform_3, window_bounds = array<i64: 16, 1>}, {pipeline_mode = #tpu.pipeline_mode<synchronous>, transform_indices = @transform_4, window_bounds = array<i64: 16, 1>}, {pipeline_mode = #tpu.pipeline_mode<synchronous>, transform_indices = @transform_5, window_bounds = array<i64: 16, 32, 256>}, {pipeline_mode = #tpu.pipeline_mode<synchronous>, transform_indices = @transform_6, window_bounds = array<i64: 32, 1>}, {pipeline_mode = #tpu.pipeline_mode<synchronous>, transform_indices = @transform_7, window_bounds = array<i64: 16, 32>}, {pipeline_mode = #tpu.pipeline_mode<synchronous>, transform_indices = @transform_8, window_bounds = array<i64: 16, 1>}, {pipeline_mode = #tpu.pipeline_mode<synchronous>, transform_indices = @transform_9, window_bounds = array<i64: 4, 16>}, {pipeline_mode = #tpu.pipeline_mode<synchronous>, transform_indices = @transform_10, window_bounds = array<i64: 4, 1>}, {transform_indices = @transform_11, window_bounds = array<i64: 1, 4, 1>}]} {
    %c0 = arith.constant 0 : index
    %c0_0 = arith.constant 0 : index
    %0 = vector.load %arg1[%c0, %c0_0] : memref<2x3072xf32, #tpu.memory_space<vmem>>, vector<2x3072xf32>
    %1 = vector.shape_cast %0 : vector<2x3072xf32> to vector<1x2x3072xf32>
    %cst = arith.constant dense<0.000000e+00> : vector<1xf32>
    %2 = vector.multi_reduction <add>, %1, %cst [1, 2] : vector<1x2x3072xf32> to vector<1xf32>
    %3 = vector.shape_cast %2 : vector<1xf32> to vector<1x1x1xf32>
    %4 = vector.extract %3[0, 0, 0] : f32 from vector<1x1x1xf32>
    %5 = arith.mulf %0, %0 : vector<2x3072xf32>
    %6 = vector.shape_cast %5 : vector<2x3072xf32> to vector<1x2x3072xf32>
    %cst_1 = arith.constant dense<0.000000e+00> : vector<1xf32>
    %7 = vector.multi_reduction <add>, %6, %cst_1 [1, 2] : vector<1x2x3072xf32> to vector<1xf32>
    %8 = vector.shape_cast %7 : vector<1xf32> to vector<1x1x1xf32>
    %9 = vector.extract %8[0, 0, 0] : f32 from vector<1x1x1xf32>
    %cst_2 = arith.constant 6.144000e+03 : f32
    %10 = arith.divf %4, %cst_2 : f32
    %11 = arith.mulf %4, %10 : f32
    %12 = arith.subf %9, %11 : f32
    %cst_3 = arith.constant 6.143000e+03 : f32
    %13 = arith.divf %12, %cst_3 : f32
    %14 = math.rsqrt %13 : f32
    %c0_4 = arith.constant 0 : index
    %c0_5 = arith.constant 0 : index
    %15 = vector.load %arg3[%c0_4, %c0_5] : memref<16x48xf32, #tpu.memory_space<vmem>>, vector<16x48xf32>
    %c0_6 = arith.constant 0 : index
    %c0_7 = arith.constant 0 : index
    %16 = vector.load %arg2[%c0_6, %c0_7] : memref<48x1024xf32, #tpu.memory_space<vmem>>, vector<48x1024xf32>
    %cst_8 = arith.constant dense<0.000000e+00> : vector<16x1024xf32>
    %17 = tpu.matmul %15, %16, %cst_8 {dimension_numbers = #tpu.dot_dimension_numbers<[1], [0], [0], [1], [0, 0, 1, 1], [], []>} : vector<16x48xf32>, vector<48x1024xf32>, vector<16x1024xf32> -> vector<16x1024xf32>
    %18 = vector.extract_strided_slice %17 {offsets = [0, 0], sizes = [16, 256], strides = [1, 1]} : vector<16x1024xf32> to vector<16x256xf32>
    %19 = vector.extract_strided_slice %17 {offsets = [0, 256], sizes = [16, 256], strides = [1, 1]} : vector<16x1024xf32> to vector<16x256xf32>
    %20 = arith.maximumf %18, %19 : vector<16x256xf32>
    %21 = vector.extract_strided_slice %17 {offsets = [0, 512], sizes = [16, 256], strides = [1, 1]} : vector<16x1024xf32> to vector<16x256xf32>
    %22 = vector.extract_strided_slice %17 {offsets = [0, 768], sizes = [16, 256], strides = [1, 1]} : vector<16x1024xf32> to vector<16x256xf32>
    %23 = arith.maximumf %21, %22 : vector<16x256xf32>
    %24 = arith.maximumf %20, %23 : vector<16x256xf32>
    %c0_9 = arith.constant 0 : index
    %c0_10 = arith.constant 0 : index
    %25 = vector.load %arg5[%c0_9, %c0_10] : memref<16x1xf32, #tpu.memory_space<vmem>>, vector<16x1xf32>
    %26 = arith.mulf %10, %14 : f32
    %c0_11 = arith.constant 0 : index
    %c0_12 = arith.constant 0 : index
    %27 = vector.load %arg4[%c0_11, %c0_12] : memref<16x1xf32, #tpu.memory_space<vmem>>, vector<16x1xf32>
    %28 = vector.broadcast %26 : f32 to vector<16x1xf32>
    %29 = arith.mulf %28, %27 : vector<16x1xf32>
    %30 = arith.subf %25, %29 : vector<16x1xf32>
    %31 = vector.broadcast %14 : f32 to vector<16x256xf32>
    %32 = arith.mulf %31, %24 : vector<16x256xf32>
    %33 = vector.broadcast %30 : vector<16x1xf32> to vector<16x256xf32>
    %34 = arith.addf %32, %33 : vector<16x256xf32>
    %cst_13 = arith.constant 0.000000e+00 : f32
    %35 = vector.broadcast %cst_13 : f32 to vector<16x256xf32>
    %36 = arith.maximumf %34, %35 : vector<16x256xf32>
    %c0_14 = arith.constant 0 : index
    %c0_15 = arith.constant 0 : index
    %c0_16 = arith.constant 0 : index
    %37 = vector.load %arg6[%c0_14, %c0_15, %c0_16] : memref<16x32x256xf32, #tpu.memory_space<vmem>>, vector<1x32x256xf32>
    %38 = vector.shape_cast %37 : vector<1x32x256xf32> to vector<32x256xf32>
    %39 = vector.extract_strided_slice %36 {offsets = [0, 0], sizes = [1, 256], strides = [1, 1]} : vector<16x256xf32> to vector<1x256xf32>
    %40 = vector.broadcast %39 : vector<1x256xf32> to vector<32x256xf32>
    %41 = arith.mulf %38, %40 : vector<32x256xf32>
    %cst_17 = arith.constant dense<0.000000e+00> : vector<32xf32>
    %42 = vector.multi_reduction <add>, %41, %cst_17 [1] : vector<32x256xf32> to vector<32xf32>
    %43 = vector.shape_cast %42 : vector<32xf32> to vector<32x1xf32>
    %c1 = arith.constant 1 : index
    %c0_18 = arith.constant 0 : index
    %c0_19 = arith.constant 0 : index
    %44 = vector.load %arg6[%c1, %c0_18, %c0_19] : memref<16x32x256xf32, #tpu.memory_space<vmem>>, vector<1x32x256xf32>
    %45 = vector.shape_cast %44 : vector<1x32x256xf32> to vector<32x256xf32>
    %46 = vector.extract_strided_slice %36 {offsets = [1, 0], sizes = [1, 256], strides = [1, 1]} : vector<16x256xf32> to vector<1x256xf32>
    %47 = vector.broadcast %46 : vector<1x256xf32> to vector<32x256xf32>
    %48 = arith.mulf %45, %47 : vector<32x256xf32>
    %cst_20 = arith.constant dense<0.000000e+00> : vector<32xf32>
    %49 = vector.multi_reduction <add>, %48, %cst_20 [1] : vector<32x256xf32> to vector<32xf32>
    %50 = vector.shape_cast %49 : vector<32xf32> to vector<32x1xf32>
    %c2 = arith.constant 2 : index
    %c0_21 = arith.constant 0 : index
    %c0_22 = arith.constant 0 : index
    %51 = vector.load %arg6[%c2, %c0_21, %c0_22] : memref<16x32x256xf32, #tpu.memory_space<vmem>>, vector<1x32x256xf32>
    %52 = vector.shape_cast %51 : vector<1x32x256xf32> to vector<32x256xf32>
    %53 = vector.extract_strided_slice %36 {offsets = [2, 0], sizes = [1, 256], strides = [1, 1]} : vector<16x256xf32> to vector<1x256xf32>
    %54 = vector.broadcast %53 : vector<1x256xf32> to vector<32x256xf32>
    %55 = arith.mulf %52, %54 : vector<32x256xf32>
    %cst_23 = arith.constant dense<0.000000e+00> : vector<32xf32>
    %56 = vector.multi_reduction <add>, %55, %cst_23 [1] : vector<32x256xf32> to vector<32xf32>
    %57 = vector.shape_cast %56 : vector<32xf32> to vector<32x1xf32>
    %c3 = arith.constant 3 : index
    %c0_24 = arith.constant 0 : index
    %c0_25 = arith.constant 0 : index
    %58 = vector.load %arg6[%c3, %c0_24, %c0_25] : memref<16x32x256xf32, #tpu.memory_space<vmem>>, vector<1x32x256xf32>
    %59 = vector.shape_cast %58 : vector<1x32x256xf32> to vector<32x256xf32>
    %60 = vector.extract_strided_slice %36 {offsets = [3, 0], sizes = [1, 256], strides = [1, 1]} : vector<16x256xf32> to vector<1x256xf32>
    %61 = vector.broadcast %60 : vector<1x256xf32> to vector<32x256xf32>
    %62 = arith.mulf %59, %61 : vector<32x256xf32>
    %cst_26 = arith.constant dense<0.000000e+00> : vector<32xf32>
    %63 = vector.multi_reduction <add>, %62, %cst_26 [1] : vector<32x256xf32> to vector<32xf32>
    %64 = vector.shape_cast %63 : vector<32xf32> to vector<32x1xf32>
    %c4 = arith.constant 4 : index
    %c0_27 = arith.constant 0 : index
    %c0_28 = arith.constant 0 : index
    %65 = vector.load %arg6[%c4, %c0_27, %c0_28] : memref<16x32x256xf32, #tpu.memory_space<vmem>>, vector<1x32x256xf32>
    %66 = vector.shape_cast %65 : vector<1x32x256xf32> to vector<32x256xf32>
    %67 = vector.extract_strided_slice %36 {offsets = [4, 0], sizes = [1, 256], strides = [1, 1]} : vector<16x256xf32> to vector<1x256xf32>
    %68 = vector.broadcast %67 : vector<1x256xf32> to vector<32x256xf32>
    %69 = arith.mulf %66, %68 : vector<32x256xf32>
    %cst_29 = arith.constant dense<0.000000e+00> : vector<32xf32>
    %70 = vector.multi_reduction <add>, %69, %cst_29 [1] : vector<32x256xf32> to vector<32xf32>
    %71 = vector.shape_cast %70 : vector<32xf32> to vector<32x1xf32>
    %c5 = arith.constant 5 : index
    %c0_30 = arith.constant 0 : index
    %c0_31 = arith.constant 0 : index
    %72 = vector.load %arg6[%c5, %c0_30, %c0_31] : memref<16x32x256xf32, #tpu.memory_space<vmem>>, vector<1x32x256xf32>
    %73 = vector.shape_cast %72 : vector<1x32x256xf32> to vector<32x256xf32>
    %74 = vector.extract_strided_slice %36 {offsets = [5, 0], sizes = [1, 256], strides = [1, 1]} : vector<16x256xf32> to vector<1x256xf32>
    %75 = vector.broadcast %74 : vector<1x256xf32> to vector<32x256xf32>
    %76 = arith.mulf %73, %75 : vector<32x256xf32>
    %cst_32 = arith.constant dense<0.000000e+00> : vector<32xf32>
    %77 = vector.multi_reduction <add>, %76, %cst_32 [1] : vector<32x256xf32> to vector<32xf32>
    %78 = vector.shape_cast %77 : vector<32xf32> to vector<32x1xf32>
    %c6 = arith.constant 6 : index
    %c0_33 = arith.constant 0 : index
    %c0_34 = arith.constant 0 : index
    %79 = vector.load %arg6[%c6, %c0_33, %c0_34] : memref<16x32x256xf32, #tpu.memory_space<vmem>>, vector<1x32x256xf32>
    %80 = vector.shape_cast %79 : vector<1x32x256xf32> to vector<32x256xf32>
    %81 = vector.extract_strided_slice %36 {offsets = [6, 0], sizes = [1, 256], strides = [1, 1]} : vector<16x256xf32> to vector<1x256xf32>
    %82 = vector.broadcast %81 : vector<1x256xf32> to vector<32x256xf32>
    %83 = arith.mulf %80, %82 : vector<32x256xf32>
    %cst_35 = arith.constant dense<0.000000e+00> : vector<32xf32>
    %84 = vector.multi_reduction <add>, %83, %cst_35 [1] : vector<32x256xf32> to vector<32xf32>
    %85 = vector.shape_cast %84 : vector<32xf32> to vector<32x1xf32>
    %c7 = arith.constant 7 : index
    %c0_36 = arith.constant 0 : index
    %c0_37 = arith.constant 0 : index
    %86 = vector.load %arg6[%c7, %c0_36, %c0_37] : memref<16x32x256xf32, #tpu.memory_space<vmem>>, vector<1x32x256xf32>
    %87 = vector.shape_cast %86 : vector<1x32x256xf32> to vector<32x256xf32>
    %88 = vector.extract_strided_slice %36 {offsets = [7, 0], sizes = [1, 256], strides = [1, 1]} : vector<16x256xf32> to vector<1x256xf32>
    %89 = vector.broadcast %88 : vector<1x256xf32> to vector<32x256xf32>
    %90 = arith.mulf %87, %89 : vector<32x256xf32>
    %cst_38 = arith.constant dense<0.000000e+00> : vector<32xf32>
    %91 = vector.multi_reduction <add>, %90, %cst_38 [1] : vector<32x256xf32> to vector<32xf32>
    %92 = vector.shape_cast %91 : vector<32xf32> to vector<32x1xf32>
    %c8 = arith.constant 8 : index
    %c0_39 = arith.constant 0 : index
    %c0_40 = arith.constant 0 : index
    %93 = vector.load %arg6[%c8, %c0_39, %c0_40] : memref<16x32x256xf32, #tpu.memory_space<vmem>>, vector<1x32x256xf32>
    %94 = vector.shape_cast %93 : vector<1x32x256xf32> to vector<32x256xf32>
    %95 = vector.extract_strided_slice %36 {offsets = [8, 0], sizes = [1, 256], strides = [1, 1]} : vector<16x256xf32> to vector<1x256xf32>
    %96 = vector.broadcast %95 : vector<1x256xf32> to vector<32x256xf32>
    %97 = arith.mulf %94, %96 : vector<32x256xf32>
    %cst_41 = arith.constant dense<0.000000e+00> : vector<32xf32>
    %98 = vector.multi_reduction <add>, %97, %cst_41 [1] : vector<32x256xf32> to vector<32xf32>
    %99 = vector.shape_cast %98 : vector<32xf32> to vector<32x1xf32>
    %c9 = arith.constant 9 : index
    %c0_42 = arith.constant 0 : index
    %c0_43 = arith.constant 0 : index
    %100 = vector.load %arg6[%c9, %c0_42, %c0_43] : memref<16x32x256xf32, #tpu.memory_space<vmem>>, vector<1x32x256xf32>
    %101 = vector.shape_cast %100 : vector<1x32x256xf32> to vector<32x256xf32>
    %102 = vector.extract_strided_slice %36 {offsets = [9, 0], sizes = [1, 256], strides = [1, 1]} : vector<16x256xf32> to vector<1x256xf32>
    %103 = vector.broadcast %102 : vector<1x256xf32> to vector<32x256xf32>
    %104 = arith.mulf %101, %103 : vector<32x256xf32>
    %cst_44 = arith.constant dense<0.000000e+00> : vector<32xf32>
    %105 = vector.multi_reduction <add>, %104, %cst_44 [1] : vector<32x256xf32> to vector<32xf32>
    %106 = vector.shape_cast %105 : vector<32xf32> to vector<32x1xf32>
    %c10 = arith.constant 10 : index
    %c0_45 = arith.constant 0 : index
    %c0_46 = arith.constant 0 : index
    %107 = vector.load %arg6[%c10, %c0_45, %c0_46] : memref<16x32x256xf32, #tpu.memory_space<vmem>>, vector<1x32x256xf32>
    %108 = vector.shape_cast %107 : vector<1x32x256xf32> to vector<32x256xf32>
    %109 = vector.extract_strided_slice %36 {offsets = [10, 0], sizes = [1, 256], strides = [1, 1]} : vector<16x256xf32> to vector<1x256xf32>
    %110 = vector.broadcast %109 : vector<1x256xf32> to vector<32x256xf32>
    %111 = arith.mulf %108, %110 : vector<32x256xf32>
    %cst_47 = arith.constant dense<0.000000e+00> : vector<32xf32>
    %112 = vector.multi_reduction <add>, %111, %cst_47 [1] : vector<32x256xf32> to vector<32xf32>
    %113 = vector.shape_cast %112 : vector<32xf32> to vector<32x1xf32>
    %c11 = arith.constant 11 : index
    %c0_48 = arith.constant 0 : index
    %c0_49 = arith.constant 0 : index
    %114 = vector.load %arg6[%c11, %c0_48, %c0_49] : memref<16x32x256xf32, #tpu.memory_space<vmem>>, vector<1x32x256xf32>
    %115 = vector.shape_cast %114 : vector<1x32x256xf32> to vector<32x256xf32>
    %116 = vector.extract_strided_slice %36 {offsets = [11, 0], sizes = [1, 256], strides = [1, 1]} : vector<16x256xf32> to vector<1x256xf32>
    %117 = vector.broadcast %116 : vector<1x256xf32> to vector<32x256xf32>
    %118 = arith.mulf %115, %117 : vector<32x256xf32>
    %cst_50 = arith.constant dense<0.000000e+00> : vector<32xf32>
    %119 = vector.multi_reduction <add>, %118, %cst_50 [1] : vector<32x256xf32> to vector<32xf32>
    %120 = vector.shape_cast %119 : vector<32xf32> to vector<32x1xf32>
    %c12 = arith.constant 12 : index
    %c0_51 = arith.constant 0 : index
    %c0_52 = arith.constant 0 : index
    %121 = vector.load %arg6[%c12, %c0_51, %c0_52] : memref<16x32x256xf32, #tpu.memory_space<vmem>>, vector<1x32x256xf32>
    %122 = vector.shape_cast %121 : vector<1x32x256xf32> to vector<32x256xf32>
    %123 = vector.extract_strided_slice %36 {offsets = [12, 0], sizes = [1, 256], strides = [1, 1]} : vector<16x256xf32> to vector<1x256xf32>
    %124 = vector.broadcast %123 : vector<1x256xf32> to vector<32x256xf32>
    %125 = arith.mulf %122, %124 : vector<32x256xf32>
    %cst_53 = arith.constant dense<0.000000e+00> : vector<32xf32>
    %126 = vector.multi_reduction <add>, %125, %cst_53 [1] : vector<32x256xf32> to vector<32xf32>
    %127 = vector.shape_cast %126 : vector<32xf32> to vector<32x1xf32>
    %c13 = arith.constant 13 : index
    %c0_54 = arith.constant 0 : index
    %c0_55 = arith.constant 0 : index
    %128 = vector.load %arg6[%c13, %c0_54, %c0_55] : memref<16x32x256xf32, #tpu.memory_space<vmem>>, vector<1x32x256xf32>
    %129 = vector.shape_cast %128 : vector<1x32x256xf32> to vector<32x256xf32>
    %130 = vector.extract_strided_slice %36 {offsets = [13, 0], sizes = [1, 256], strides = [1, 1]} : vector<16x256xf32> to vector<1x256xf32>
    %131 = vector.broadcast %130 : vector<1x256xf32> to vector<32x256xf32>
    %132 = arith.mulf %129, %131 : vector<32x256xf32>
    %cst_56 = arith.constant dense<0.000000e+00> : vector<32xf32>
    %133 = vector.multi_reduction <add>, %132, %cst_56 [1] : vector<32x256xf32> to vector<32xf32>
    %134 = vector.shape_cast %133 : vector<32xf32> to vector<32x1xf32>
    %c14 = arith.constant 14 : index
    %c0_57 = arith.constant 0 : index
    %c0_58 = arith.constant 0 : index
    %135 = vector.load %arg6[%c14, %c0_57, %c0_58] : memref<16x32x256xf32, #tpu.memory_space<vmem>>, vector<1x32x256xf32>
    %136 = vector.shape_cast %135 : vector<1x32x256xf32> to vector<32x256xf32>
    %137 = vector.extract_strided_slice %36 {offsets = [14, 0], sizes = [1, 256], strides = [1, 1]} : vector<16x256xf32> to vector<1x256xf32>
    %138 = vector.broadcast %137 : vector<1x256xf32> to vector<32x256xf32>
    %139 = arith.mulf %136, %138 : vector<32x256xf32>
    %cst_59 = arith.constant dense<0.000000e+00> : vector<32xf32>
    %140 = vector.multi_reduction <add>, %139, %cst_59 [1] : vector<32x256xf32> to vector<32xf32>
    %141 = vector.shape_cast %140 : vector<32xf32> to vector<32x1xf32>
    %c15 = arith.constant 15 : index
    %c0_60 = arith.constant 0 : index
    %c0_61 = arith.constant 0 : index
    %142 = vector.load %arg6[%c15, %c0_60, %c0_61] : memref<16x32x256xf32, #tpu.memory_space<vmem>>, vector<1x32x256xf32>
    %143 = vector.shape_cast %142 : vector<1x32x256xf32> to vector<32x256xf32>
    %144 = vector.extract_strided_slice %36 {offsets = [15, 0], sizes = [1, 256], strides = [1, 1]} : vector<16x256xf32> to vector<1x256xf32>
    %145 = vector.broadcast %144 : vector<1x256xf32> to vector<32x256xf32>
    %146 = arith.mulf %143, %145 : vector<32x256xf32>
    %cst_62 = arith.constant dense<0.000000e+00> : vector<32xf32>
    %147 = vector.multi_reduction <add>, %146, %cst_62 [1] : vector<32x256xf32> to vector<32xf32>
    %148 = vector.shape_cast %147 : vector<32xf32> to vector<32x1xf32>
    %149 = arith.addf %43, %50 : vector<32x1xf32>
    %150 = arith.addf %57, %64 : vector<32x1xf32>
    %151 = arith.addf %71, %78 : vector<32x1xf32>
    %152 = arith.addf %85, %92 : vector<32x1xf32>
    %153 = arith.addf %99, %106 : vector<32x1xf32>
    %154 = arith.addf %113, %120 : vector<32x1xf32>
    %155 = arith.addf %127, %134 : vector<32x1xf32>
    %156 = arith.addf %141, %148 : vector<32x1xf32>
    %157 = arith.addf %149, %150 : vector<32x1xf32>
    %158 = arith.addf %151, %152 : vector<32x1xf32>
    %159 = arith.addf %153, %154 : vector<32x1xf32>
    %160 = arith.addf %155, %156 : vector<32x1xf32>
    %161 = arith.addf %157, %158 : vector<32x1xf32>
    %162 = arith.addf %159, %160 : vector<32x1xf32>
    %163 = arith.addf %161, %162 : vector<32x1xf32>
    %c0_63 = arith.constant 0 : index
    %c0_64 = arith.constant 0 : index
    %164 = vector.load %arg7[%c0_63, %c0_64] : memref<32x1xf32, #tpu.memory_space<vmem>>, vector<32x1xf32>
    %165 = arith.addf %163, %164 : vector<32x1xf32>
    %cst_65 = arith.constant 0.000000e+00 : f32
    %166 = vector.broadcast %cst_65 : f32 to vector<32x1xf32>
    %167 = arith.maximumf %165, %166 : vector<32x1xf32>
    %c0_66 = arith.constant 0 : index
    %c0_67 = arith.constant 0 : index
    %168 = vector.load %arg8[%c0_66, %c0_67] : memref<16x32xf32, #tpu.memory_space<vmem>>, vector<16x32xf32>
    %cst_68 = arith.constant dense<0.000000e+00> : vector<16x1xf32>
    %169 = tpu.matmul %168, %167, %cst_68 {dimension_numbers = #tpu.dot_dimension_numbers<[1], [0], [0], [1], [0, 0, 1, 1], [], []>} : vector<16x32xf32>, vector<32x1xf32>, vector<16x1xf32> -> vector<16x1xf32>
    %c0_69 = arith.constant 0 : index
    %c0_70 = arith.constant 0 : index
    %170 = vector.load %arg9[%c0_69, %c0_70] : memref<16x1xf32, #tpu.memory_space<vmem>>, vector<16x1xf32>
    %171 = arith.addf %169, %170 : vector<16x1xf32>
    %cst_71 = arith.constant 0.000000e+00 : f32
    %172 = vector.broadcast %cst_71 : f32 to vector<16x1xf32>
    %173 = arith.maximumf %171, %172 : vector<16x1xf32>
    %c0_72 = arith.constant 0 : index
    %c0_73 = arith.constant 0 : index
    %174 = vector.load %arg10[%c0_72, %c0_73] : memref<4x16xf32, #tpu.memory_space<vmem>>, vector<4x16xf32>
    %cst_74 = arith.constant dense<0.000000e+00> : vector<4x1xf32>
    %175 = tpu.matmul %174, %173, %cst_74 {dimension_numbers = #tpu.dot_dimension_numbers<[1], [0], [0], [1], [0, 0, 1, 1], [], []>} : vector<4x16xf32>, vector<16x1xf32>, vector<4x1xf32> -> vector<4x1xf32>
    %c0_75 = arith.constant 0 : index
    %c0_76 = arith.constant 0 : index
    %176 = vector.load %arg11[%c0_75, %c0_76] : memref<4x1xf32, #tpu.memory_space<vmem>>, vector<4x1xf32>
    %177 = arith.addf %175, %176 : vector<4x1xf32>
    %c0_77 = arith.constant 0 : index
    %c0_78 = arith.constant 0 : index
    %c0_79 = arith.constant 0 : index
    %178 = vector.load %arg12[%c0_77, %c0_78, %c0_79] : memref<1x4x1xf32, #tpu.memory_space<vmem>>, vector<1x4x1xf32>
    %179 = vector.shape_cast %178 : vector<1x4x1xf32> to vector<4x1xf32>
    %180 = vector.shape_cast %177 : vector<4x1xf32> to vector<1x4x1xf32>
    tpu.vector_store %arg12[%c0_77, %c0_78, %c0_79], %180 {strides = array<i32>} : memref<1x4x1xf32, #tpu.memory_space<vmem>>, vector<1x4x1xf32>,
    return
  }
  func.func @transform_0(%arg0: i32) -> (i32, i32) {
    %c0_i32 = arith.constant 0 : i32
    %c0_i32_0 = arith.constant 0 : i32
    %c0_i32_1 = arith.constant 0 : i32
    return %c0_i32, %c0_i32_0 : i32, i32
  }
  func.func @transform_1(%arg0: i32) -> (i32, i32) {
    %c0_i32 = arith.constant 0 : i32
    %c0_i32_0 = arith.constant 0 : i32
    return %c0_i32, %arg0 : i32, i32
  }
  func.func @transform_2(%arg0: i32) -> (i32, i32) {
    %c0_i32 = arith.constant 0 : i32
    %c0_i32_0 = arith.constant 0 : i32
    %c0_i32_1 = arith.constant 0 : i32
    return %c0_i32, %c0_i32_0 : i32, i32
  }
  func.func @transform_3(%arg0: i32) -> (i32, i32) {
    %c0_i32 = arith.constant 0 : i32
    %c0_i32_0 = arith.constant 0 : i32
    %c0_i32_1 = arith.constant 0 : i32
    return %c0_i32, %c0_i32_0 : i32, i32
  }
  func.func @transform_4(%arg0: i32) -> (i32, i32) {
    %c0_i32 = arith.constant 0 : i32
    %c0_i32_0 = arith.constant 0 : i32
    %c0_i32_1 = arith.constant 0 : i32
    return %c0_i32, %c0_i32_0 : i32, i32
  }
  func.func @transform_5(%arg0: i32) -> (i32, i32, i32) {
    %c0_i32 = arith.constant 0 : i32
    %c0_i32_0 = arith.constant 0 : i32
    %c0_i32_1 = arith.constant 0 : i32
    %c0_i32_2 = arith.constant 0 : i32
    return %c0_i32, %c0_i32_0, %c0_i32_1 : i32, i32, i32
  }
  func.func @transform_6(%arg0: i32) -> (i32, i32) {
    %c0_i32 = arith.constant 0 : i32
    %c0_i32_0 = arith.constant 0 : i32
    %c0_i32_1 = arith.constant 0 : i32
    return %c0_i32, %c0_i32_0 : i32, i32
  }
  func.func @transform_7(%arg0: i32) -> (i32, i32) {
    %c0_i32 = arith.constant 0 : i32
    %c0_i32_0 = arith.constant 0 : i32
    %c0_i32_1 = arith.constant 0 : i32
    return %c0_i32, %c0_i32_0 : i32, i32
  }
  func.func @transform_8(%arg0: i32) -> (i32, i32) {
    %c0_i32 = arith.constant 0 : i32
    %c0_i32_0 = arith.constant 0 : i32
    %c0_i32_1 = arith.constant 0 : i32
    return %c0_i32, %c0_i32_0 : i32, i32
  }
  func.func @transform_9(%arg0: i32) -> (i32, i32) {
    %c0_i32 = arith.constant 0 : i32
    %c0_i32_0 = arith.constant 0 : i32
    %c0_i32_1 = arith.constant 0 : i32
    return %c0_i32, %c0_i32_0 : i32, i32
  }
  func.func @transform_10(%arg0: i32) -> (i32, i32) {
    %c0_i32 = arith.constant 0 : i32
    %c0_i32_0 = arith.constant 0 : i32
    %c0_i32_1 = arith.constant 0 : i32
    return %c0_i32, %c0_i32_0 : i32, i32
  }
  func.func @transform_11(%arg0: i32) -> (i32, i32, i32) {
    %c0_i32 = arith.constant 0 : i32
    %c0_i32_0 = arith.constant 0 : i32
    %c0_i32_1 = arith.constant 0 : i32
    return %arg0, %c0_i32, %c0_i32_0 : i32, i32, i32
  }
}

</mosaic_0001>

<llo_original>
// kernel: neuralnet_forward.1
$region0: #{neuralnet_forward.1}
  #allocation0 [shape = 'u32[]', space=smem, size = 0x4, offset = 0x4, fixed_abs, tag = 'smem constant byte address 0x4 - core index']
  #allocation1 [shape = 'u32[144,128]{1,0:T(1,128)}', space=vmem, size = 0x12000, scoped, tag = 'internal scratch']
  %s0 = inlined_call_operand.vmem [shape: f32[2,3072], index: 0, kind: input, shape index: {}]
  %s1 = inlined_call_operand.vmem [shape: f32[48,2048], index: 1, kind: input, shape index: {}]
  %s2 = inlined_call_operand.vmem [shape: f32[16,48], index: 2, kind: input, shape index: {}]
  %s3 = inlined_call_operand.vmem [shape: f32[16,1], index: 3, kind: input, shape index: {}]
  %s4 = inlined_call_operand.vmem [shape: f32[16,1], index: 4, kind: input, shape index: {}]
  %s5 = inlined_call_operand.vmem [shape: f32[16,32,256], index: 5, kind: input, shape index: {}]
  %s6 = inlined_call_operand.vmem [shape: f32[32,1], index: 6, kind: input, shape index: {}]
  %s7 = inlined_call_operand.vmem [shape: f32[16,32], index: 7, kind: input, shape index: {}]
  %s8 = inlined_call_operand.vmem [shape: f32[16,1], index: 8, kind: input, shape index: {}]
  %s9 = inlined_call_operand.vmem [shape: f32[4,16], index: 9, kind: input, shape index: {}]
  %s10 = inlined_call_operand.vmem [shape: f32[4,1], index: 10, kind: input, shape index: {}]
  %s11 = inlined_call_operand.vmem [shape: f32[2,4,1], index: 11, kind: output, shape index: {}]
  %s12 = sld [smem:[#allocation0]]
  $region100: #{neuralnet_forward.1} parent=0
    _
  %s14 = ssub.s32 1, %s12
  %s15 = scalar_select 0, %s14, %s12
  $region1: #{neuralnet_forward.1} parent=0
    #allocation2 [shape = 'u8[393216]{0}', space=vmem, size = 0x60000, scoped, tag = 'input window, operand 1']
    loop: start=0, step=1, limit=4
    $region2: #{neuralnet_forward.1} parent=1 // loop_pre_header
      _
    $region3: #{neuralnet_forward.1} parent=1 // loop_header
      %s17 = sphi 0, %s21
      %p18 = scmp.ge.s32.totalorder %s17, 4
      %s25 = sphi 0, %s25
      %s27 = sphi 0, %s25
      %s28 = sphi 0, %s27
      %s42 = sphi 0, %s28
      %s48 = sphi 0, %s50
      %s51 = sphi 0, %s48
      %s52 = sphi 0, %s51
      %s68 = sphi 0, %s52
      %s72 = sphi 0, %s72
      %s74 = sphi 0, %s72
      %s75 = sphi 0, %s74
      %s89 = sphi 0, %s75
      %s93 = sphi 0, %s93
      %s95 = sphi 0, %s93
      %s96 = sphi 0, %s95
      %s110 = sphi 0, %s96
      %s114 = sphi 0, %s114
      %s116 = sphi 0, %s114
      %s117 = sphi 0, %s116
      %s131 = sphi 0, %s117
      %s135 = sphi 0, %s135
      %s137 = sphi 0, %s135
      %s138 = sphi 0, %s137
      %s152 = sphi 0, %s138
      %s156 = sphi 0, %s156
      %s158 = sphi 0, %s156
      %s159 = sphi 0, %s158
      %s173 = sphi 0, %s159
      %s177 = sphi 0, %s177
      %s179 = sphi 0, %s177
      %s180 = sphi 0, %s179
      %s194 = sphi 0, %s180
      %s198 = sphi 0, %s198
      %s200 = sphi 0, %s198
      %s201 = sphi 0, %s200
      %s215 = sphi 0, %s201
      %s219 = sphi 0, %s219
      %s221 = sphi 0, %s219
      %s222 = sphi 0, %s221
      %s236 = sphi 0, %s222
      %s240 = sphi 0, %s240
      %s242 = sphi 0, %s240
      %s243 = sphi 0, %s242
      %s257 = sphi 0, %s243
      %s263 = sphi 0, %s265
      %s266 = sphi 0, %s263
      %s267 = sphi 0, %s266
      %s283 = sphi 0, %s267
    $region4: #{neuralnet_forward.1} parent=1 // loop_header_branch
      %20 = sbr.rel (%p18) target = $region8
    $region5: #{neuralnet_forward.1} parent=1 // loop_body
      %s22 = ssub.s32 %s17, 1
      %s23 = ssub.s32 %s17, 2
      %s24 = sadd.s32 %s17, 1
      %s26 = sadd.s32 %s25, 1
      %p29 = scmp.eq.s32.totalorder %s17, 1
      %p30 = scmp.ne.s32.totalorder %s25, %s27
      %p31 = scmp.eq.s32.totalorder %s17, 0
      %p32 = por %p30, %p31
      %p33 = scmp.ne.s32.totalorder %s25, %s27
      %p34 = scmp.eq.s32.totalorder %s22, 1
      %p35 = por %p33, %p34
      %p36 = scmp.ne.s32.totalorder %s27, %s28
      %p37 = scmp.eq.s32.totalorder %s22, 0
      %p38 = por %p36, %p37
      %p39 = scmp.ne.s32.totalorder %s27, %s28
      %p40 = scmp.eq.s32.totalorder %s23, 1
      %p41 = por %p39, %p40
      %p43 = scmp.ne.s32.totalorder %s28, %s42
      %p44 = scmp.eq.s32.totalorder %s23, 0
      %p45 = por %p43, %p44
      %s46 = ssub.s32 %s17, %s24
      %p47 = scmp.eq.s32.totalorder %s46, 0
      %s49 = sadd.s32 %s48, 1
      %s50 = scalar_select %p47, %s48, %s49
      %p53 = pneg %p47
      %p54 = scmp.eq.s32.totalorder %s17, 1
      %p55 = por %p53, %p54
      %p56 = scmp.ne.s32.totalorder %s48, %s51
      %p57 = scmp.eq.s32.totalorder %s17, 0
      %p58 = por %p56, %p57
      %p59 = scmp.ne.s32.totalorder %s48, %s51
      %p60 = scmp.eq.s32.totalorder %s22, 1
      %p61 = por %p59, %p60
      %p62 = scmp.ne.s32.totalorder %s51, %s52
      %p63 = scmp.eq.s32.totalorder %s22, 0
      %p64 = por %p62, %p63
      %p65 = scmp.ne.s32.totalorder %s51, %s52
      %p66 = scmp.eq.s32.totalorder %s23, 1
      %p67 = por %p65, %p66
      %p69 = scmp.ne.s32.totalorder %s52, %s68
      %p70 = scmp.eq.s32.totalorder %s23, 0
      %p71 = por %p69, %p70
      %s73 = sadd.s32 %s72, 1
      %p76 = scmp.eq.s32.totalorder %s17, 1
      %p77 = scmp.ne.s32.totalorder %s72, %s74
      %p78 = scmp.eq.s32.totalorder %s17, 0
      %p79 = por %p77, %p78
      %p80 = scmp.ne.s32.totalorder %s72, %s74
      %p81 = scmp.eq.s32.totalorder %s22, 1
      %p82 = por %p80, %p81
      %p83 = scmp.ne.s32.totalorder %s74, %s75
      %p84 = scmp.eq.s32.totalorder %s22, 0
      %p85 = por %p83, %p84
      %p86 = scmp.ne.s32.totalorder %s74, %s75
      %p87 = scmp.eq.s32.totalorder %s23, 1
      %p88 = por %p86, %p87
      %p90 = scmp.ne.s32.totalorder %s75, %s89
      %p91 = scmp.eq.s32.totalorder %s23, 0
      %p92 = por %p90, %p91
      %s94 = sadd.s32 %s93, 1
      %p97 = scmp.eq.s32.totalorder %s17, 1
      %p98 = scmp.ne.s32.totalorder %s93, %s95
      %p99 = scmp.eq.s32.totalorder %s17, 0
      %p100 = por %p98, %p99
      %p101 = scmp.ne.s32.totalorder %s93, %s95
      %p102 = scmp.eq.s32.totalorder %s22, 1
      %p103 = por %p101, %p102
      %p104 = scmp.ne.s32.totalorder %s95, %s96
      %p105 = scmp.eq.s32.totalorder %s22, 0
      %p106 = por %p104, %p105
      %p107 = scmp.ne.s32.totalorder %s95, %s96
      %p108 = scmp.eq.s32.totalorder %s23, 1
      %p109 = por %p107, %p108
      %p111 = scmp.ne.s32.totalorder %s96, %s110
      %p112 = scmp.eq.s32.totalorder %s23, 0
      %p113 = por %p111, %p112
      %s115 = sadd.s32 %s114, 1
      %p118 = scmp.eq.s32.totalorder %s17, 1
      %p119 = scmp.ne.s32.totalorder %s114, %s116
      %p120 = scmp.eq.s32.totalorder %s17, 0
      %p121 = por %p119, %p120
      %p122 = scmp.ne.s32.totalorder %s114, %s116
      %p123 = scmp.eq.s32.totalorder %s22, 1
      %p124 = por %p122, %p123
      %p125 = scmp.ne.s32.totalorder %s116, %s117
      %p126 = scmp.eq.s32.totalorder %s22, 0
      %p127 = por %p125, %p126
      %p128 = scmp.ne.s32.totalorder %s116, %s117
      %p129 = scmp.eq.s32.totalorder %s23, 1
      %p130 = por %p128, %p129
      %p132 = scmp.ne.s32.totalorder %s117, %s131
      %p133 = scmp.eq.s32.totalorder %s23, 0
      %p134 = por %p132, %p133
      %s136 = sadd.s32 %s135, 1
      %p139 = scmp.eq.s32.totalorder %s17, 1
      %p140 = scmp.ne.s32.totalorder %s135, %s137
      %p141 = scmp.eq.s32.totalorder %s17, 0
      %p142 = por %p140, %p141
      %p143 = scmp.ne.s32.totalorder %s135, %s137
      %p144 = scmp.eq.s32.totalorder %s22, 1
      %p145 = por %p143, %p144
      %p146 = scmp.ne.s32.totalorder %s137, %s138
      %p147 = scmp.eq.s32.totalorder %s22, 0
      %p148 = por %p146, %p147
      %p149 = scmp.ne.s32.totalorder %s137, %s138
      %p150 = scmp.eq.s32.totalorder %s23, 1
      %p151 = por %p149, %p150
      %p153 = scmp.ne.s32.totalorder %s138, %s152
      %p154 = scmp.eq.s32.totalorder %s23, 0
      %p155 = por %p153, %p154
      %s157 = sadd.s32 %s156, 1
      %p160 = scmp.eq.s32.totalorder %s17, 1
      %p161 = scmp.ne.s32.totalorder %s156, %s158
      %p162 = scmp.eq.s32.totalorder %s17, 0
      %p163 = por %p161, %p162
      %p164 = scmp.ne.s32.totalorder %s156, %s158
      %p165 = scmp.eq.s32.totalorder %s22, 1
      %p166 = por %p164, %p165
      %p167 = scmp.ne.s32.totalorder %s158, %s159
      %p168 = scmp.eq.s32.totalorder %s22, 0
      %p169 = por %p167, %p168
      %p170 = scmp.ne.s32.totalorder %s158, %s159
      %p171 = scmp.eq.s32.totalorder %s23, 1
      %p172 = por %p170, %p171
      %p174 = scmp.ne.s32.totalorder %s159, %s173
      %p175 = scmp.eq.s32.totalorder %s23, 0
      %p176 = por %p174, %p175
      %s178 = sadd.s32 %s177, 1
      %p181 = scmp.eq.s32.totalorder %s17, 1
      %p182 = scmp.ne.s32.totalorder %s177, %s179
      %p183 = scmp.eq.s32.totalorder %s17, 0
      %p184 = por %p182, %p183
      %p185 = scmp.ne.s32.totalorder %s177, %s179
      %p186 = scmp.eq.s32.totalorder %s22, 1
      %p187 = por %p185, %p186
      %p188 = scmp.ne.s32.totalorder %s179, %s180
      %p189 = scmp.eq.s32.totalorder %s22, 0
      %p190 = por %p188, %p189
      %p191 = scmp.ne.s32.totalorder %s179, %s180
      %p192 = scmp.eq.s32.totalorder %s23, 1
      %p193 = por %p191, %p192
      %p195 = scmp.ne.s32.totalorder %s180, %s194
      %p196 = scmp.eq.s32.totalorder %s23, 0
      %p197 = por %p195, %p196
      %s199 = sadd.s32 %s198, 1
      %p202 = scmp.eq.s32.totalorder %s17, 1
      %p203 = scmp.ne.s32.totalorder %s198, %s200
      %p204 = scmp.eq.s32.totalorder %s17, 0
      %p205 = por %p203, %p204
      %p206 = scmp.ne.s32.totalorder %s198, %s200
      %p207 = scmp.eq.s32.totalorder %s22, 1
      %p208 = por %p206, %p207
      %p209 = scmp.ne.s32.totalorder %s200, %s201
      %p210 = scmp.eq.s32.totalorder %s22, 0
      %p211 = por %p209, %p210
      %p212 = scmp.ne.s32.totalorder %s200, %s201
      %p213 = scmp.eq.s32.totalorder %s23, 1
      %p214 = por %p212, %p213
      %p216 = scmp.ne.s32.totalorder %s201, %s215
      %p217 = scmp.eq.s32.totalorder %s23, 0
      %p218 = por %p216, %p217
      %s220 = sadd.s32 %s219, 1
      %p223 = scmp.eq.s32.totalorder %s17, 1
      %p224 = scmp.ne.s32.totalorder %s219, %s221
      %p225 = scmp.eq.s32.totalorder %s17, 0
      %p226 = por %p224, %p225
      %p227 = scmp.ne.s32.totalorder %s219, %s221
      %p228 = scmp.eq.s32.totalorder %s22, 1
      %p229 = por %p227, %p228
      %p230 = scmp.ne.s32.totalorder %s221, %s222
      %p231 = scmp.eq.s32.totalorder %s22, 0
      %p232 = por %p230, %p231
      %p233 = scmp.ne.s32.totalorder %s221, %s222
      %p234 = scmp.eq.s32.totalorder %s23, 1
      %p235 = por %p233, %p234
      %p237 = scmp.ne.s32.totalorder %s222, %s236
      %p238 = scmp.eq.s32.totalorder %s23, 0
      %p239 = por %p237, %p238
      %s241 = sadd.s32 %s240, 1
      %p244 = scmp.eq.s32.totalorder %s17, 1
      %p245 = scmp.ne.s32.totalorder %s240, %s242
      %p246 = scmp.eq.s32.totalorder %s17, 0
      %p247 = por %p245, %p246
      %p248 = scmp.ne.s32.totalorder %s240, %s242
      %p249 = scmp.eq.s32.totalorder %s22, 1
      %p250 = por %p248, %p249
      %p251 = scmp.ne.s32.totalorder %s242, %s243
      %p252 = scmp.eq.s32.totalorder %s22, 0
      %p253 = por %p251, %p252
      %p254 = scmp.ne.s32.totalorder %s242, %s243
      %p255 = scmp.eq.s32.totalorder %s23, 1
      %p256 = por %p254, %p255
      %p258 = scmp.ne.s32.totalorder %s243, %s257
      %p259 = scmp.eq.s32.totalorder %s23, 0
      %p260 = por %p258, %p259
      %s261 = ssub.s32 %s17, %s24
      %p262 = scmp.eq.s32.totalorder %s261, 0
      %s264 = sadd.s32 %s263, 1
      %s265 = scalar_select %p262, %s263, %s264
      %p268 = pneg %p262
      %p269 = scmp.eq.s32.totalorder %s17, 1
      %p270 = por %p268, %p269
      %p271 = scmp.ne.s32.totalorder %s263, %s266
      %p272 = scmp.eq.s32.totalorder %s17, 0
      %p273 = por %p271, %p272
      %p274 = scmp.ne.s32.totalorder %s263, %s266
      %p275 = scmp.eq.s32.totalorder %s22, 1
      %p276 = por %p274, %p275
      %p277 = scmp.ne.s32.totalorder %s266, %s267
      %p278 = scmp.eq.s32.totalorder %s22, 0
      %p279 = por %p277, %p278
      %p280 = scmp.ne.s32.totalorder %s266, %s267
      %p281 = scmp.eq.s32.totalorder %s23, 1
      %p282 = por %p280, %p281
      %p284 = scmp.ne.s32.totalorder %s267, %s283
      %p285 = scmp.eq.s32.totalorder %s23, 0
      %p286 = por %p284, %p285
      %p287 = scmp.le.s32.totalorder 1, %s17
      %p288 = scmp.lt.s32.totalorder %s17, 3
      %p289 = pnand %p287, %p288
      %p290 = pneg %p289
      // Predicated region
      $region9: #{neuralnet_forward.1} parent=5 // pred_check
        _
      $region10: #{neuralnet_forward.1} parent=5 // pred_check_branch
        %292 = sbr.rel (%p289) target = $region12
      $region11: #{neuralnet_forward.1} parent=5 // pred_region
        %s293 = ssub.s32 %s17, 1
        // Predicated region
        $region13: #{neuralnet_forward.1} parent=11 // pred_check
          %p294 = pneg %p38
        $region14: #{neuralnet_forward.1} parent=11 // pred_check_branch
          %296 = sbr.rel (%p294) target = $region16
        $region15: #{neuralnet_forward.1} parent=11 // pred_region
          _
        $region16: #{neuralnet_forward.1} parent=11 // pred_fallthru
          _
        // Predicated region
        $region17: #{neuralnet_forward.1} parent=11 // pred_check
          %p297 = pneg %p85
        $region18: #{neuralnet_forward.1} parent=11 // pred_check_branch
          %299 = sbr.rel (%p297) target = $region20
        $region19: #{neuralnet_forward.1} parent=11 // pred_region
          _
        $region20: #{neuralnet_forward.1} parent=11 // pred_fallthru
          _
        // Predicated region
        $region21: #{neuralnet_forward.1} parent=11 // pred_check
          %p300 = pneg %p106
        $region22: #{neuralnet_forward.1} parent=11 // pred_check_branch
          %302 = sbr.rel (%p300) target = $region24
        $region23: #{neuralnet_forward.1} parent=11 // pred_region
          _
        $region24: #{neuralnet_forward.1} parent=11 // pred_fallthru
          _
        // Predicated region
        $region25: #{neuralnet_forward.1} parent=11 // pred_check
          %p303 = pneg %p127
        $region26: #{neuralnet_forward.1} parent=11 // pred_check_branch
          %305 = sbr.rel (%p303) target = $region28
        $region27: #{neuralnet_forward.1} parent=11 // pred_region
          _
        $region28: #{neuralnet_forward.1} parent=11 // pred_fallthru
          _
        // Predicated region
        $region29: #{neuralnet_forward.1} parent=11 // pred_check
          %p306 = pneg %p148
        $region30: #{neuralnet_forward.1} parent=11 // pred_check_branch
          %308 = sbr.rel (%p306) target = $region32
        $region31: #{neuralnet_forward.1} parent=11 // pred_region
          _
        $region32: #{neuralnet_forward.1} parent=11 // pred_fallthru
          _
        // Predicated region
        $region33: #{neuralnet_forward.1} parent=11 // pred_check
          %p309 = pneg %p169
        $region34: #{neuralnet_forward.1} parent=11 // pred_check_branch
          %311 = sbr.rel (%p309) target = $region36
        $region35: #{neuralnet_forward.1} parent=11 // pred_region
          _
        $region36: #{neuralnet_forward.1} parent=11 // pred_fallthru
          _
        // Predicated region
        $region37: #{neuralnet_forward.1} parent=11 // pred_check
          %p312 = pneg %p190
        $region38: #{neuralnet_forward.1} parent=11 // pred_check_branch
          %314 = sbr.rel (%p312) target = $region40
        $region39: #{neuralnet_forward.1} parent=11 // pred_region
          _
        $region40: #{neuralnet_forward.1} parent=11 // pred_fallthru
          _
        // Predicated region
        $region41: #{neuralnet_forward.1} parent=11 // pred_check
          %p315 = pneg %p211
        $region42: #{neuralnet_forward.1} parent=11 // pred_check_branch
          %317 = sbr.rel (%p315) target = $region44
        $region43: #{neuralnet_forward.1} parent=11 // pred_region
          _
        $region44: #{neuralnet_forward.1} parent=11 // pred_fallthru
          _
        // Predicated region
        $region45: #{neuralnet_forward.1} parent=11 // pred_check
          %p318 = pneg %p232
        $region46: #{neuralnet_forward.1} parent=11 // pred_check_branch
          %320 = sbr.rel (%p318) target = $region48
        $region47: #{neuralnet_forward.1} parent=11 // pred_region
          _
        $region48: #{neuralnet_forward.1} parent=11 // pred_fallthru
          _
        // Predicated region
        $region49: #{neuralnet_forward.1} parent=11 // pred_check
          %p321 = pneg %p253
        $region50: #{neuralnet_forward.1} parent=11 // pred_check_branch
          %323 = sbr.rel (%p321) target = $region52
        $region51: #{neuralnet_forward.1} parent=11 // pred_region
          _
        $region52: #{neuralnet_forward.1} parent=11 // pred_fallthru
          _
      $region12: #{neuralnet_forward.1} parent=5 // pred_fallthru
        _
      %p324 = scmp.lt.s32.totalorder %s17, 2
      // Predicated region
      $region53: #{neuralnet_forward.1} parent=5 // pred_check
        %p325 = pneg %p324
      $region54: #{neuralnet_forward.1} parent=5 // pred_check_branch
        %327 = sbr.rel (%p325) target = $region56
      $region55: #{neuralnet_forward.1} parent=5 // pred_region
        // Predicated region
        $region57: #{neuralnet_forward.1} parent=55 // pred_check
          %p328 = pneg %p58
        $region58: #{neuralnet_forward.1} parent=55 // pred_check_branch
          %330 = sbr.rel (%p328) target = $region60
        $region59: #{neuralnet_forward.1} parent=55 // pred_region
          %s331 = sand.u32 %s48, 1
          %s332 = sand.u32 %s48, 1
          %s333 = smul.addr %s332, 384
          %s334 = scalar_lea.vmem [#allocation2], %s333
          %s335 = smul.u32 8, %s17
          %s336 = smul.addr %s335, 8
          %s337 = scalar_lea.vmem %s1, %s336
          // Predicated region
          $region61: #{neuralnet_forward.1} parent=59 // pred_check
            _
          $region62: #{neuralnet_forward.1} parent=59 // pred_check_branch
            %339 = sbr.rel (0) target = $region64
          $region63: #{neuralnet_forward.1} parent=59 // pred_region
            // Predicated region
            $region65: #{neuralnet_forward.1} parent=63 // pred_check
              _
            $region66: #{neuralnet_forward.1} parent=63 // pred_check_branch
              %341 = sbr.rel (0) target = $region68
            $region67: #{neuralnet_forward.1} parent=63 // pred_region
              loop: start=0, step=1, limit=1
              $region69: #{neuralnet_forward.1} parent=67 // loop_pre_header
                _
              $region70: #{neuralnet_forward.1} parent=67 // loop_header
                %s343 = sphi 0, %s347
                %p344 = scmp.ge.s32.totalorder %s343, 1
                %s348 = sphi %s337, %s337
                %s349 = sphi %s334, %s334
              $region71: #{neuralnet_forward.1} parent=67 // loop_header_branch
                %346 = sbr.rel (%p344) target = $region75
              $region72: #{neuralnet_forward.1} parent=67 // loop_body
                %v350 = vld [vmem:[%s348] sm:$0xff]
                %351 = vst [vmem:[%s349] sm:$0xff] %v350
                %v352 = vld [vmem:[%s348 + $0x8] sm:$0xff]
                %353 = vst [vmem:[%s349 + $0x8] sm:$0xff] %v352
                %v354 = vld [vmem:[%s348 + $0x10] sm:$0xff]
                %355 = vst [vmem:[%s349 + $0x10] sm:$0xff] %v354
                %v356 = vld [vmem:[%s348 + $0x18] sm:$0xff]
                %357 = vst [vmem:[%s349 + $0x18] sm:$0xff] %v356
                %v358 = vld [vmem:[%s348 + $0x20] sm:$0xff]
                %359 = vst [vmem:[%s349 + $0x20] sm:$0xff] %v358
                %v360 = vld [vmem:[%s348 + $0x28] sm:$0xff]
                %361 = vst [vmem:[%s349 + $0x28] sm:$0xff] %v360
                %v362 = vld [vmem:[%s348 + $0x30] sm:$0xff]
                %363 = vst [vmem:[%s349 + $0x30] sm:$0xff] %v362
                %v364 = vld [vmem:[%s348 + $0x38] sm:$0xff]
                %365 = vst [vmem:[%s349 + $0x38] sm:$0xff] %v364
                %v366 = vld [vmem:[%s348 + $0x80] sm:$0xff]
                %367 = vst [vmem:[%s349 + $0x40] sm:$0xff] %v366
                %v368 = vld [vmem:[%s348 + $0x88] sm:$0xff]
                %369 = vst [vmem:[%s349 + $0x48] sm:$0xff] %v368
                %v370 = vld [vmem:[%s348 + $0x90] sm:$0xff]
                %371 = vst [vmem:[%s349 + $0x50] sm:$0xff] %v370
                %v372 = vld [vmem:[%s348 + $0x98] sm:$0xff]
                %373 = vst [vmem:[%s349 + $0x58] sm:$0xff] %v372
                %v374 = vld [vmem:[%s348 + $0xa0] sm:$0xff]
                %375 = vst [vmem:[%s349 + $0x60] sm:$0xff] %v374
                %v376 = vld [vmem:[%s348 + $0xa8] sm:$0xff]
                %377 = vst [vmem:[%s349 + $0x68] sm:$0xff] %v376
                %v378 = vld [vmem:[%s348 + $0xb0] sm:$0xff]
                %379 = vst [vmem:[%s349 + $0x70] sm:$0xff] %v378
                %v380 = vld [vmem:[%s348 + $0xb8] sm:$0xff]
                %381 = vst [vmem:[%s349 + $0x78] sm:$0xff] %v380
                %v382 = vld [vmem:[%s348 + $0x100] sm:$0xff]
                %383 = vst [vmem:[%s349 + $0x80] sm:$0xff] %v382
                %v384 = vld [vmem:[%s348 + $0x108] sm:$0xff]
                %385 = vst [vmem:[%s349 + $0x88] sm:$0xff] %v384
                %v386 = vld [vmem:[%s348 + $0x110] sm:$0xff]
                %387 = vst [vmem:[%s349 + $0x90] sm:$0xff] %v386
                %v388 = vld [vmem:[%s348 + $0x118] sm:$0xff]
                %389 = vst [vmem:[%s349 + $0x98] sm:$0xff] %v388
                %v390 = vld [vmem:[%s348 + $0x120] sm:$0xff]
                %391 = vst [vmem:[%s349 + $0xa0] sm:$0xff] %v390
                %v392 = vld [vmem:[%s348 + $0x128] sm:$0xff]
                %393 = vst [vmem:[%s349 + $0xa8] sm:$0xff] %v392
                %v394 = vld [vmem:[%s348 + $0x130] sm:$0xff]
                %395 = vst [vmem:[%s349 + $0xb0] sm:$0xff] %v394
                %v396 = vld [vmem:[%s348 + $0x138] sm:$0xff]
                %397 = vst [vmem:[%s349 + $0xb8] sm:$0xff] %v396
                %v398 = vld [vmem:[%s348 + $0x180] sm:$0xff]
                %399 = vst [vmem:[%s349 + $0xc0] sm:$0xff] %v398
                %v400 = vld [vmem:[%s348 + $0x188] sm:$0xff]
                %401 = vst [vmem:[%s349 + $0xc8] sm:$0xff] %v400
                %v402 = vld [vmem:[%s348 + $0x190] sm:$0xff]
                %403 = vst [vmem:[%s349 + $0xd0] sm:$0xff] %v402
                %v404 = vld [vmem:[%s348 + $0x198] sm:$0xff]
                %405 = vst [vmem:[%s349 + $0xd8] sm:$0xff] %v404
                %v406 = vld [vmem:[%s348 + $0x1a0] sm:$0xff]
                %407 = vst [vmem:[%s349 + $0xe0] sm:$0xff] %v406
                %v408 = vld [vmem:[%s348 + $0x1a8] sm:$0xff]
                %409 = vst [vmem:[%s349 + $0xe8] sm:$0xff] %v408
                %v410 = vld [vmem:[%s348 + $0x1b0] sm:$0xff]
                %411 = vst [vmem:[%s349 + $0xf0] sm:$0xff] %v410
                %v412 = vld [vmem:[%s348 + $0x1b8] sm:$0xff]
                %413 = vst [vmem:[%s349 + $0xf8] sm:$0xff] %v412
                %v414 = vld [vmem:[%s348 + $0x200] sm:$0xff]
                %415 = vst [vmem:[%s349 + $0x100] sm:$0xff] %v414
                %v416 = vld [vmem:[%s348 + $0x208] sm:$0xff]
                %417 = vst [vmem:[%s349 + $0x108] sm:$0xff] %v416
                %v418 = vld [vmem:[%s348 + $0x210] sm:$0xff]
                %419 = vst [vmem:[%s349 + $0x110] sm:$0xff] %v418
                %v420 = vld [vmem:[%s348 + $0x218] sm:$0xff]
                %421 = vst [vmem:[%s349 + $0x118] sm:$0xff] %v420
                %v422 = vld [vmem:[%s348 + $0x220] sm:$0xff]
                %423 = vst [vmem:[%s349 + $0x120] sm:$0xff] %v422
                %v424 = vld [vmem:[%s348 + $0x228] sm:$0xff]
                %425 = vst [vmem:[%s349 + $0x128] sm:$0xff] %v424
                %v426 = vld [vmem:[%s348 + $0x230] sm:$0xff]
                %427 = vst [vmem:[%s349 + $0x130] sm:$0xff] %v426
                %v428 = vld [vmem:[%s348 + $0x238] sm:$0xff]
                %429 = vst [vmem:[%s349 + $0x138] sm:$0xff] %v428
                %v430 = vld [vmem:[%s348 + $0x280] sm:$0xff]
                %431 = vst [vmem:[%s349 + $0x140] sm:$0xff] %v430
                %v432 = vld [vmem:[%s348 + $0x288] sm:$0xff]
                %433 = vst [vmem:[%s349 + $0x148] sm:$0xff] %v432
                %v434 = vld [vmem:[%s348 + $0x290] sm:$0xff]
                %435 = vst [vmem:[%s349 + $0x150] sm:$0xff] %v434
                %v436 = vld [vmem:[%s348 + $0x298] sm:$0xff]
                %437 = vst [vmem:[%s349 + $0x158] sm:$0xff] %v436
                %v438 = vld [vmem:[%s348 + $0x2a0] sm:$0xff]
                %439 = vst [vmem:[%s349 + $0x160] sm:$0xff] %v438
                %v440 = vld [vmem:[%s348 + $0x2a8] sm:$0xff]
                %441 = vst [vmem:[%s349 + $0x168] sm:$0xff] %v440
                %v442 = vld [vmem:[%s348 + $0x2b0] sm:$0xff]
                %443 = vst [vmem:[%s349 + $0x170] sm:$0xff] %v442
                %v444 = vld [vmem:[%s348 + $0x2b8] sm:$0xff]
                %445 = vst [vmem:[%s349 + $0x178] sm:$0xff] %v444
              $region73: #{neuralnet_forward.1} parent=67 // loop_footer
                %s347 = sadd.s32 1, %s343
              $region74: #{neuralnet_forward.1} parent=67 // loop_footer_branch
                %342 = sbr.rel target = $region70
              $region75: #{neuralnet_forward.1} parent=67 // loop_exit
                _
            $region68: #{neuralnet_forward.1} parent=63 // pred_fallthru
              _
            // Predicated region
            $region76: #{neuralnet_forward.1} parent=63 // pred_check
              _
            $region77: #{neuralnet_forward.1} parent=63 // pred_check_branch
              %447 = sbr.rel target = $region79
            $region78: #{neuralnet_forward.1} parent=63 // pred_region
              _
            $region79: #{neuralnet_forward.1} parent=63 // pred_fallthru
              _
          $region64: #{neuralnet_forward.1} parent=59 // pred_fallthru
            _
          %448 = vnop
        $region60: #{neuralnet_forward.1} parent=55 // pred_fallthru
          _
      $region56: #{neuralnet_forward.1} parent=5 // pred_fallthru
        _
      %p449 = scmp.le.s32.totalorder 1, %s17
      %p450 = scmp.lt.s32.totalorder %s17, 3
      %p451 = pnand %p449, %p450
      %p452 = pneg %p451
      // Predicated region
      $region80: #{neuralnet_forward.1} parent=5 // pred_check
        _
      $region81: #{neuralnet_forward.1} parent=5 // pred_check_branch
        %454 = sbr.rel (%p451) target = $region83
      $region82: #{neuralnet_forward.1} parent=5 // pred_region
        %s455 = ssub.s32 %s17, 1
        %s456 = sand.u32 %s51, 1
        %s457 = sand.u32 %s51, 1
        %s458 = smul.addr %s457, 384
        %s459 = scalar_lea.vmem [#allocation2], %s458
        // Predicated region
        $region84: #{neuralnet_forward.1} parent=82 // pred_check
          %p460 = pneg %p64
        $region85: #{neuralnet_forward.1} parent=82 // pred_check_branch
          %462 = sbr.rel (%p460) target = $region87
        $region86: #{neuralnet_forward.1} parent=82 // pred_region
          _
        $region87: #{neuralnet_forward.1} parent=82 // pred_fallthru
          _
        %p463 = pneg %p38
        %p464 = pneg %p35
        %s465 = sand.u32 %s51, 1
        %s466 = sand.u32 %s51, 1
        %s467 = smul.addr %s466, 384
        %s468 = scalar_lea.vmem [#allocation2], %s467
        %p469 = pneg %p64
        %p470 = pneg %p61
        %p471 = pneg %p85
        %p472 = pneg %p82
        %p473 = pneg %p106
        %p474 = pneg %p103
        %p475 = pneg %p127
        %p476 = pneg %p124
        %p477 = pneg %p148
        %p478 = pneg %p145
        %p479 = pneg %p169
        %p480 = pneg %p166
        %p481 = pneg %p190
        %p482 = pneg %p187
        %p483 = pneg %p211
        %p484 = pneg %p208
        %p485 = pneg %p232
        %p486 = pneg %p229
        %p487 = pneg %p253
        %p488 = pneg %p250
        %p489 = pneg %p279
        %p490 = pneg %p276
        %p491 = scmp.lt.s32.totalorder %s22, 1
        %s492 = scalar_select %p491, %s22, 1
        %s493 = smul.addr %s492, 4
        %s494 = scalar_lea.vmem %s11, %s493
        %s495 = smul.u32 8, %s22
        %p496 = scmp.lt.s32.totalorder %s22, 1
        %s497 = scalar_select %p496, %s22, 1
        %s498 = smul.addr %s497, 4
        %s499 = scalar_lea.vmem %s11, %s498
        %v500 = vld [vmem:[%s0] sm:$0xff]
        %v501 = vld [vmem:[%s0 + $0x8] sm:$0xff]
        %v502 = vld [vmem:[%s0 + $0x10] sm:$0xff]
        %v503 = vld [vmem:[%s0 + $0x18] sm:$0xff]
        %v504 = vld [vmem:[%s0 + $0x20] sm:$0xff]
        %v505 = vld [vmem:[%s0 + $0x28] sm:$0xff]
        %v512 = vcombine.high %v500, %v500
        %v514 = vunpack.c.l.s4 1983009808
        %v515 = vunpack.c.0.s8 %v514
        %v516 = vlaneseq
        %v517 = vshrl.u32 %v516, 7
        %v518 = vsub.s32 %v515, %v517
        %v519 = vrot.slane %v500, %v518
        %v521 = vunpack.c.l.s4 1983009808
        %v522 = vunpack.c.0.s8 %v521
        %v523 = vlaneseq
        %v524 = vshrl.u32 %v523, 7
        %v525 = vsub.s32 %v522, %v524
        %v526 = vrot.slane %v512, %v525
        %v527 = vcombine.high %v519, %v519
        %v528 = vcombine.high %v526, %v526
        %v529 = vcombine.high %v501, %v501
        %v531 = vunpack.c.l.s4 1983009808
        %v532 = vunpack.c.0.s8 %v531
        %v533 = vlaneseq
        %v534 = vshrl.u32 %v533, 7
        %v535 = vsub.s32 %v532, %v534
        %v536 = vrot.slane %v501, %v535
        %v538 = vunpack.c.l.s4 1983009808
        %v539 = vunpack.c.0.s8 %v538
        %v540 = vlaneseq
        %v541 = vshrl.u32 %v540, 7
        %v542 = vsub.s32 %v539, %v541
        %v543 = vrot.slane %v529, %v542
        %v544 = vcombine.high %v536, %v536
        %v545 = vcombine.high %v543, %v543
        %v546 = vcombine.high %v502, %v502
        %v548 = vunpack.c.l.s4 1983009808
        %v549 = vunpack.c.0.s8 %v548
        %v550 = vlaneseq
        %v551 = vshrl.u32 %v550, 7
        %v552 = vsub.s32 %v549, %v551
        %v553 = vrot.slane %v502, %v552
        %v555 = vunpack.c.l.s4 1983009808
        %v556 = vunpack.c.0.s8 %v555
        %v557 = vlaneseq
        %v558 = vshrl.u32 %v557, 7
        %v559 = vsub.s32 %v556, %v558
        %v560 = vrot.slane %v546, %v559
        %v561 = vcombine.high %v553, %v553
        %v562 = vcombine.high %v560, %v560
        %v563 = vcombine.high %v503, %v503
        %v565 = vunpack.c.l.s4 1983009808
        %v566 = vunpack.c.0.s8 %v565
        %v567 = vlaneseq
        %v568 = vshrl.u32 %v567, 7
        %v569 = vsub.s32 %v566, %v568
        %v570 = vrot.slane %v503, %v569
        %v572 = vunpack.c.l.s4 1983009808
        %v573 = vunpack.c.0.s8 %v572
        %v574 = vlaneseq
        %v575 = vshrl.u32 %v574, 7
        %v576 = vsub.s32 %v573, %v575
        %v577 = vrot.slane %v563, %v576
        %v578 = vcombine.high %v570, %v570
        %v579 = vcombine.high %v577, %v577
        %v580 = vcombine.high %v504, %v504
        %v582 = vunpack.c.l.s4 1983009808
        %v583 = vunpack.c.0.s8 %v582
        %v584 = vlaneseq
        %v585 = vshrl.u32 %v584, 7
        %v586 = vsub.s32 %v583, %v585
        %v587 = vrot.slane %v504, %v586
        %v589 = vunpack.c.l.s4 1983009808
        %v590 = vunpack.c.0.s8 %v589
        %v591 = vlaneseq
        %v592 = vshrl.u32 %v591, 7
        %v593 = vsub.s32 %v590, %v592
        %v594 = vrot.slane %v580, %v593
        %v595 = vcombine.high %v587, %v587
        %v596 = vcombine.high %v594, %v594
        %v597 = vcombine.high %v505, %v505
        %v599 = vunpack.c.l.s4 1983009808
        %v600 = vunpack.c.0.s8 %v599
        %v601 = vlaneseq
        %v602 = vshrl.u32 %v601, 7
        %v603 = vsub.s32 %v600, %v602
        %v604 = vrot.slane %v505, %v603
        %v606 = vunpack.c.l.s4 1983009808
        %v607 = vunpack.c.0.s8 %v606
        %v608 = vlaneseq
        %v609 = vshrl.u32 %v608, 7
        %v610 = vsub.s32 %v607, %v609
        %v611 = vrot.slane %v597, %v610
        %v612 = vcombine.high %v604, %v604
        %v613 = vcombine.high %v611, %v611
        %vm638 = vcmask 1041408
        %v639 = vsel %vm638, %v519, 0.0
        %v640 = vsel %vm638, %v527, 0.0
        %v641 = vadd.f32 %v639, %v640
        %v642 = vsel %vm638, %v526, 0.0
        %v643 = vadd.f32 %v641, %v642
        %v644 = vsel %vm638, %v528, 0.0
        %v645 = vadd.f32 %v643, %v644
        %v646 = vsel %vm638, %v536, 0.0
        %v647 = vadd.f32 %v645, %v646
        %v648 = vsel %vm638, %v544, 0.0
        %v649 = vadd.f32 %v647, %v648
        %v650 = vsel %vm638, %v543, 0.0
        %v651 = vadd.f32 %v649, %v650
        %v652 = vsel %vm638, %v545, 0.0
        %v653 = vadd.f32 %v651, %v652
        %v654 = vsel %vm638, %v553, 0.0
        %v655 = vadd.f32 %v653, %v654
        %v656 = vsel %vm638, %v561, 0.0
        %v657 = vadd.f32 %v655, %v656
        %v658 = vsel %vm638, %v560, 0.0
        %v659 = vadd.f32 %v657, %v658
        %v660 = vsel %vm638, %v562, 0.0
        %v661 = vadd.f32 %v659, %v660
        %v662 = vsel %vm638, %v570, 0.0
        %v663 = vadd.f32 %v661, %v662
        %v664 = vsel %vm638, %v578, 0.0
        %v665 = vadd.f32 %v663, %v664
        %v666 = vsel %vm638, %v577, 0.0
        %v667 = vadd.f32 %v665, %v666
        %v668 = vsel %vm638, %v579, 0.0
        %v669 = vadd.f32 %v667, %v668
        %v670 = vsel %vm638, %v587, 0.0
        %v671 = vadd.f32 %v669, %v670
        %v672 = vsel %vm638, %v595, 0.0
        %v673 = vadd.f32 %v671, %v672
        %v674 = vsel %vm638, %v594, 0.0
        %v675 = vadd.f32 %v673, %v674
        %v676 = vsel %vm638, %v596, 0.0
        %v677 = vadd.f32 %v675, %v676
        %v678 = vsel %vm638, %v604, 0.0
        %v679 = vadd.f32 %v677, %v678
        %v680 = vsel %vm638, %v612, 0.0
        %v681 = vadd.f32 %v679, %v680
        %v682 = vsel %vm638, %v611, 0.0
        %v683 = vadd.f32 %v681, %v682
        %v684 = vsel %vm638, %v613, 0.0
        %v685 = vadd.f32 %v683, %v684
        %686 = vadd.xlane.f32.xlu0 %v685
        %v687 = vpop.xlane.xlu0 %686
        %v688 = vrot.slane %v687, 4
        %v689 = vadd.f32 %v687, %v688
        %v690 = vrot.slane %v689, 2
        %v691 = vadd.f32 %v689, %v690
        %v692 = vrot.slane %v691, 1
        %v693 = vadd.f32 %v691, %v692
        %s694 = vtos %v693
        %v695 = vmul.f32 %v500, %v500
        %v696 = vmul.f32 %v501, %v501
        %v697 = vmul.f32 %v502, %v502
        %v698 = vmul.f32 %v503, %v503
        %v699 = vmul.f32 %v504, %v504
        %v700 = vmul.f32 %v505, %v505
        %v707 = vcombine.high %v695, %v695
        %v709 = vunpack.c.l.s4 1983009808
        %v710 = vunpack.c.0.s8 %v709
        %v711 = vlaneseq
        %v712 = vshrl.u32 %v711, 7
        %v713 = vsub.s32 %v710, %v712
        %v714 = vrot.slane %v695, %v713
        %v716 = vunpack.c.l.s4 1983009808
        %v717 = vunpack.c.0.s8 %v716
        %v718 = vlaneseq
        %v719 = vshrl.u32 %v718, 7
        %v720 = vsub.s32 %v717, %v719
        %v721 = vrot.slane %v707, %v720
        %v722 = vcombine.high %v714, %v714
        %v723 = vcombine.high %v721, %v721
        %v724 = vcombine.high %v696, %v696
        %v726 = vunpack.c.l.s4 1983009808
        %v727 = vunpack.c.0.s8 %v726
        %v728 = vlaneseq
        %v729 = vshrl.u32 %v728, 7
        %v730 = vsub.s32 %v727, %v729
        %v731 = vrot.slane %v696, %v730
        %v733 = vunpack.c.l.s4 1983009808
        %v734 = vunpack.c.0.s8 %v733
        %v735 = vlaneseq
        %v736 = vshrl.u32 %v735, 7
        %v737 = vsub.s32 %v734, %v736
        %v738 = vrot.slane %v724, %v737
        %v739 = vcombine.high %v731, %v731
        %v740 = vcombine.high %v738, %v738
        %v741 = vcombine.high %v697, %v697
        %v743 = vunpack.c.l.s4 1983009808
        %v744 = vunpack.c.0.s8 %v743
        %v745 = vlaneseq
        %v746 = vshrl.u32 %v745, 7
        %v747 = vsub.s32 %v744, %v746
        %v748 = vrot.slane %v697, %v747
        %v750 = vunpack.c.l.s4 1983009808
        %v751 = vunpack.c.0.s8 %v750
        %v752 = vlaneseq
        %v753 = vshrl.u32 %v752, 7
        %v754 = vsub.s32 %v751, %v753
        %v755 = vrot.slane %v741, %v754
        %v756 = vcombine.high %v748, %v748
        %v757 = vcombine.high %v755, %v755
        %v758 = vcombine.high %v698, %v698
        %v760 = vunpack.c.l.s4 1983009808
        %v761 = vunpack.c.0.s8 %v760
        %v762 = vlaneseq
        %v763 = vshrl.u32 %v762, 7
        %v764 = vsub.s32 %v761, %v763
        %v765 = vrot.slane %v698, %v764
        %v767 = vunpack.c.l.s4 1983009808
        %v768 = vunpack.c.0.s8 %v767
        %v769 = vlaneseq
        %v770 = vshrl.u32 %v769, 7
        %v771 = vsub.s32 %v768, %v770
        %v772 = vrot.slane %v758, %v771
        %v773 = vcombine.high %v765, %v765
        %v774 = vcombine.high %v772, %v772
        %v775 = vcombine.high %v699, %v699
        %v777 = vunpack.c.l.s4 1983009808
        %v778 = vunpack.c.0.s8 %v777
        %v779 = vlaneseq
        %v780 = vshrl.u32 %v779, 7
        %v781 = vsub.s32 %v778, %v780
        %v782 = vrot.slane %v699, %v781
        %v784 = vunpack.c.l.s4 1983009808
        %v785 = vunpack.c.0.s8 %v784
        %v786 = vlaneseq
        %v787 = vshrl.u32 %v786, 7
        %v788 = vsub.s32 %v785, %v787
        %v789 = vrot.slane %v775, %v788
        %v790 = vcombine.high %v782, %v782
        %v791 = vcombine.high %v789, %v789
        %v792 = vcombine.high %v700, %v700
        %v794 = vunpack.c.l.s4 1983009808
        %v795 = vunpack.c.0.s8 %v794
        %v796 = vlaneseq
        %v797 = vshrl.u32 %v796, 7
        %v798 = vsub.s32 %v795, %v797
        %v799 = vrot.slane %v700, %v798
        %v801 = vunpack.c.l.s4 1983009808
        %v802 = vunpack.c.0.s8 %v801
        %v803 = vlaneseq
        %v804 = vshrl.u32 %v803, 7
        %v805 = vsub.s32 %v802, %v804
        %v806 = vrot.slane %v792, %v805
        %v807 = vcombine.high %v799, %v799
        %v808 = vcombine.high %v806, %v806
        %v833 = vsel %vm638, %v714, 0.0
        %v834 = vsel %vm638, %v722, 0.0
        %v835 = vadd.f32 %v833, %v834
        %v836 = vsel %vm638, %v721, 0.0
        %v837 = vadd.f32 %v835, %v836
        %v838 = vsel %vm638, %v723, 0.0
        %v839 = vadd.f32 %v837, %v838
        %v840 = vsel %vm638, %v731, 0.0
        %v841 = vadd.f32 %v839, %v840
        %v842 = vsel %vm638, %v739, 0.0
        %v843 = vadd.f32 %v841, %v842
        %v844 = vsel %vm638, %v738, 0.0
        %v845 = vadd.f32 %v843, %v844
        %v846 = vsel %vm638, %v740, 0.0
        %v847 = vadd.f32 %v845, %v846
        %v848 = vsel %vm638, %v748, 0.0
        %v849 = vadd.f32 %v847, %v848
        %v850 = vsel %vm638, %v756, 0.0
        %v851 = vadd.f32 %v849, %v850
        %v852 = vsel %vm638, %v755, 0.0
        %v853 = vadd.f32 %v851, %v852
        %v854 = vsel %vm638, %v757, 0.0
        %v855 = vadd.f32 %v853, %v854
        %v856 = vsel %vm638, %v765, 0.0
        %v857 = vadd.f32 %v855, %v856
        %v858 = vsel %vm638, %v773, 0.0
        %v859 = vadd.f32 %v857, %v858
        %v860 = vsel %vm638, %v772, 0.0
        %v861 = vadd.f32 %v859, %v860
        %v862 = vsel %vm638, %v774, 0.0
        %v863 = vadd.f32 %v861, %v862
        %v864 = vsel %vm638, %v782, 0.0
        %v865 = vadd.f32 %v863, %v864
        %v866 = vsel %vm638, %v790, 0.0
        %v867 = vadd.f32 %v865, %v866
        %v868 = vsel %vm638, %v789, 0.0
        %v869 = vadd.f32 %v867, %v868
        %v870 = vsel %vm638, %v791, 0.0
        %v871 = vadd.f32 %v869, %v870
        %v872 = vsel %vm638, %v799, 0.0
        %v873 = vadd.f32 %v871, %v872
        %v874 = vsel %vm638, %v807, 0.0
        %v875 = vadd.f32 %v873, %v874
        %v876 = vsel %vm638, %v806, 0.0
        %v877 = vadd.f32 %v875, %v876
        %v878 = vsel %vm638, %v808, 0.0
        %v879 = vadd.f32 %v877, %v878
        %880 = vadd.xlane.f32.xlu0 %v879
        %v881 = vpop.xlane.xlu0 %880
        %v882 = vrot.slane %v881, 4
        %v883 = vadd.f32 %v881, %v882
        %v884 = vrot.slane %v883, 2
        %v885 = vadd.f32 %v883, %v884
        %v886 = vrot.slane %v885, 1
        %v887 = vadd.f32 %v885, %v886
        %s888 = vtos %v887
        %v889 = vrcp.pop 6144.0
        %s890 = vtos %v889
        %s891 = smul.f32 %s694, %s890
        %s892 = smul.f32 %s694, %s891
        %s893 = ssub.f32 %s888, %s892
        %v894 = vrcp.pop 6143.0
        %s895 = vtos %v894
        %s896 = smul.f32 %s893, %s895
        %v897 = vstv %s896
        %v898 = vrsqrt.pop %v897
        %s899 = vtos %v898
        %v900 = vld [vmem:[%s2] sm:$0xff]
        %v901 = vld [vmem:[%s2 + $0x8] sm:$0xff]
        %v902 = vld [vmem:[%s459] sm:$0xff]
        %v903 = vld [vmem:[%s459 + $0x8] sm:$0xff]
        %v904 = vld [vmem:[%s459 + $0x10] sm:$0xff]
        %v905 = vld [vmem:[%s459 + $0x18] sm:$0xff]
        %v906 = vld [vmem:[%s459 + $0x20] sm:$0xff]
        %v907 = vld [vmem:[%s459 + $0x28] sm:$0xff]
        %v908 = vld [vmem:[%s459 + $0x30] sm:$0xff]
        %v909 = vld [vmem:[%s459 + $0x38] sm:$0xff]
        %v910 = vld [vmem:[%s459 + $0x40] sm:$0xff]
        %v911 = vld [vmem:[%s459 + $0x48] sm:$0xff]
        %v912 = vld [vmem:[%s459 + $0x50] sm:$0xff]
        %v913 = vld [vmem:[%s459 + $0x58] sm:$0xff]
        %v914 = vld [vmem:[%s459 + $0x60] sm:$0xff]
        %v915 = vld [vmem:[%s459 + $0x68] sm:$0xff]
        %v916 = vld [vmem:[%s459 + $0x70] sm:$0xff]
        %v917 = vld [vmem:[%s459 + $0x78] sm:$0xff]
        %v918 = vld [vmem:[%s459 + $0x80] sm:$0xff]
        %v919 = vld [vmem:[%s459 + $0x88] sm:$0xff]
        %v920 = vld [vmem:[%s459 + $0x90] sm:$0xff]
        %v921 = vld [vmem:[%s459 + $0x98] sm:$0xff]
        %v922 = vld [vmem:[%s459 + $0xa0] sm:$0xff]
        %v923 = vld [vmem:[%s459 + $0xa8] sm:$0xff]
        %v924 = vld [vmem:[%s459 + $0xb0] sm:$0xff]
        %v925 = vld [vmem:[%s459 + $0xb8] sm:$0xff]
        %v926 = vld [vmem:[%s459 + $0xc0] sm:$0xff]
        %v927 = vld [vmem:[%s459 + $0xc8] sm:$0xff]
        %v928 = vld [vmem:[%s459 + $0xd0] sm:$0xff]
        %v929 = vld [vmem:[%s459 + $0xd8] sm:$0xff]
        %v930 = vld [vmem:[%s459 + $0xe0] sm:$0xff]
        %v931 = vld [vmem:[%s459 + $0xe8] sm:$0xff]
        %v932 = vld [vmem:[%s459 + $0xf0] sm:$0xff]
        %v933 = vld [vmem:[%s459 + $0xf8] sm:$0xff]
        %v934 = vld [vmem:[%s459 + $0x100] sm:$0xff]
        %v935 = vld [vmem:[%s459 + $0x108] sm:$0xff]
        %v936 = vld [vmem:[%s459 + $0x110] sm:$0xff]
        %v937 = vld [vmem:[%s459 + $0x118] sm:$0xff]
        %v938 = vld [vmem:[%s459 + $0x120] sm:$0xff]
        %v939 = vld [vmem:[%s459 + $0x128] sm:$0xff]
        %v940 = vld [vmem:[%s459 + $0x130] sm:$0xff]
        %v941 = vld [vmem:[%s459 + $0x138] sm:$0xff]
        %v942 = vld [vmem:[%s459 + $0x140] sm:$0xff]
        %v943 = vld [vmem:[%s459 + $0x148] sm:$0xff]
        %v944 = vld [vmem:[%s459 + $0x150] sm:$0xff]
        %v945 = vld [vmem:[%s459 + $0x158] sm:$0xff]
        %v946 = vld [vmem:[%s459 + $0x160] sm:$0xff]
        %v947 = vld [vmem:[%s459 + $0x168] sm:$0xff]
        %v948 = vld [vmem:[%s459 + $0x170] sm:$0xff]
        %v949 = vld [vmem:[%s459 + $0x178] sm:$0xff]
        %vm950 = vcmask 392192
        %v952 = vsel %vm950, %v900, 0
        %v955 = vsel %vm950, %v901, 0
        %957 = vmatprep.subr.mxu0 0.0
        %958 = vmatpush1.msra.mxu0 0.0
        %959 = vmatprep.subr.mxu0 0.0
        %960 = vmatpush1.msra.mxu0 0.0
        %961 = vmatprep.subr.mxu0 0.0
        %962 = vmatpush1.msra.mxu0 0.0
        %963 = vmatprep.subr.mxu0 0.0
        %964 = vmatpush1.msra.mxu0 0.0
        %965 = vmatprep.subr.mxu0 0.0
        %966 = vmatpush1.msra.mxu0 0.0
        %967 = vmatprep.subr.mxu0 0.0
        %968 = vmatpush1.msra.mxu0 0.0
        %969 = vmatprep.subr.mxu0 0.0
        %970 = vmatpush1.msra.mxu0 0.0
        %971 = vmatprep.subr.mxu0 0.0
        %972 = vmatpush1.msra.mxu0 0.0
        %973 = vmatprep.subr.mxu0 0.0
        %974 = vmatpush1.msra.mxu0 0.0
        %975 = vmatprep.subr.mxu0 0.0
        %976 = vmatpush1.msra.mxu0 0.0
        %977 = vmatprep.subr.mxu0 %v943
        %978 = vmatpush1.msra.mxu0 %v942
        %979 = vmatprep.subr.mxu0 %v935
        %980 = vmatpush1.msra.mxu0 %v934
        %981 = vmatprep.subr.mxu0 %v927
        %982 = vmatpush1.msra.mxu0 %v926
        %983 = vmatprep.subr.mxu0 %v919
        %984 = vmatpush1.msra.mxu0 %v918
        %985 = vmatprep.subr.mxu0 %v911
        %986 = vmatpush1.msra.mxu0 %v910
        %987 = vmatprep.subr.mxu0 %v903
        %988 = vmatpush1.msra.mxu0 %v902
        %989 = vmatprep.subr.mxu0 0.0
        %990 = vmatpush2.msra.mxu0 0.0
        %991 = vmatprep.subr.mxu0 0.0
        %992 = vmatpush2.msra.mxu0 0.0
        %993 = vmatprep.subr.mxu0 0.0
        %994 = vmatpush2.msra.mxu0 0.0
        %995 = vmatprep.subr.mxu0 0.0
        %996 = vmatpush2.msra.mxu0 0.0
        %997 = vmatprep.subr.mxu0 0.0
        %998 = vmatpush2.msra.mxu0 0.0
        %999 = vmatprep.subr.mxu0 0.0
        %1000 = vmatpush2.msra.mxu0 0.0
        %1001 = vmatprep.subr.mxu0 0.0
        %1002 = vmatpush2.msra.mxu0 0.0
        %1003 = vmatprep.subr.mxu0 0.0
        %1004 = vmatpush2.msra.mxu0 0.0
        %1005 = vmatprep.subr.mxu0 0.0
        %1006 = vmatpush2.msra.mxu0 0.0
        %1007 = vmatprep.subr.mxu0 0.0
        %1008 = vmatpush2.msra.mxu0 0.0
        %1009 = vmatprep.subr.mxu0 0.0
        %1010 = vmatpush2.msra.mxu0 0.0
        %1011 = vmatprep.subr.mxu0 0.0
        %1012 = vmatpush2.msra.mxu0 0.0
        %1013 = vmatprep.subr.mxu0 0.0
        %1014 = vmatpush2.msra.mxu0 0.0
        %1015 = vmatprep.subr.mxu0 0.0
        %1016 = vmatpush2.msra.mxu0 0.0
        %1017 = vmatprep.subr.mxu0 0.0
        %1018 = vmatpush2.msra.mxu0 0.0
        %1019 = vmatprep.subr.mxu0 0.0
        %1020 = vmatpush2.msra.mxu0 0.0
        %1021 = vmatprep.mubr.f32.mxu0 0.0
        %1022 = vmatmul.mubr.f32.gmra.mxu0 %v952
        %v1023 = vpop.f32.mrf.mxu0
        %v1024 = vadd.f32 0.0, %v1023
        %v1025 = vpop.f32.mrf.mxu0
        %v1026 = vadd.f32 0.0, %v1025
        %1027 = vmatprep.mubr.f32.mxu0 0.0
        %1028 = vmatmul.mubr.f32.gmra.mxu0 %v955
        %v1029 = vpop.f32.mrf.mxu0
        %v1030 = vadd.f32 0.0, %v1029
        %v1031 = vpop.f32.mrf.mxu0
        %v1032 = vadd.f32 0.0, %v1031
        %1033 = vdwg.mxu0
        %1034 = vmatprep.subr.mxu0 0.0
        %1035 = vmatpush1.msra.mxu0 0.0
        %1036 = vmatprep.subr.mxu0 0.0
        %1037 = vmatpush1.msra.mxu0 0.0
        %1038 = vmatprep.subr.mxu0 0.0
        %1039 = vmatpush1.msra.mxu0 0.0
        %1040 = vmatprep.subr.mxu0 0.0
        %1041 = vmatpush1.msra.mxu0 0.0
        %1042 = vmatprep.subr.mxu0 0.0
        %1043 = vmatpush1.msra.mxu0 0.0
        %1044 = vmatprep.subr.mxu0 0.0
        %1045 = vmatpush1.msra.mxu0 0.0
        %1046 = vmatprep.subr.mxu0 0.0
        %1047 = vmatpush1.msra.mxu0 0.0
        %1048 = vmatprep.subr.mxu0 0.0
        %1049 = vmatpush1.msra.mxu0 0.0
        %1050 = vmatprep.subr.mxu0 0.0
        %1051 = vmatpush1.msra.mxu0 0.0
        %1052 = vmatprep.subr.mxu0 0.0
        %1053 = vmatpush1.msra.mxu0 0.0
        %1054 = vmatprep.subr.mxu0 %v945
        %1055 = vmatpush1.msra.mxu0 %v944
        %1056 = vmatprep.subr.mxu0 %v937
        %1057 = vmatpush1.msra.mxu0 %v936
        %1058 = vmatprep.subr.mxu0 %v929
        %1059 = vmatpush1.msra.mxu0 %v928
        %1060 = vmatprep.subr.mxu0 %v921
        %1061 = vmatpush1.msra.mxu0 %v920
        %1062 = vmatprep.subr.mxu0 %v913
        %1063 = vmatpush1.msra.mxu0 %v912
        %1064 = vmatprep.subr.mxu0 %v905
        %1065 = vmatpush1.msra.mxu0 %v904
        %1066 = vmatprep.subr.mxu0 0.0
        %1067 = vmatpush2.msra.mxu0 0.0
        %1068 = vmatprep.subr.mxu0 0.0
        %1069 = vmatpush2.msra.mxu0 0.0
        %1070 = vmatprep.subr.mxu0 0.0
        %1071 = vmatpush2.msra.mxu0 0.0
        %1072 = vmatprep.subr.mxu0 0.0
        %1073 = vmatpush2.msra.mxu0 0.0
        %1074 = vmatprep.subr.mxu0 0.0
        %1075 = vmatpush2.msra.mxu0 0.0
        %1076 = vmatprep.subr.mxu0 0.0
        %1077 = vmatpush2.msra.mxu0 0.0
        %1078 = vmatprep.subr.mxu0 0.0
        %1079 = vmatpush2.msra.mxu0 0.0
        %1080 = vmatprep.subr.mxu0 0.0
        %1081 = vmatpush2.msra.mxu0 0.0
        %1082 = vmatprep.subr.mxu0 0.0
        %1083 = vmatpush2.msra.mxu0 0.0
        %1084 = vmatprep.subr.mxu0 0.0
        %1085 = vmatpush2.msra.mxu0 0.0
        %1086 = vmatprep.subr.mxu0 0.0
        %1087 = vmatpush2.msra.mxu0 0.0
        %1088 = vmatprep.subr.mxu0 0.0
        %1089 = vmatpush2.msra.mxu0 0.0
        %1090 = vmatprep.subr.mxu0 0.0
        %1091 = vmatpush2.msra.mxu0 0.0
        %1092 = vmatprep.subr.mxu0 0.0
        %1093 = vmatpush2.msra.mxu0 0.0
        %1094 = vmatprep.subr.mxu0 0.0
        %1095 = vmatpush2.msra.mxu0 0.0
        %1096 = vmatprep.subr.mxu0 0.0
        %1097 = vmatpush2.msra.mxu0 0.0
        %1098 = vmatprep.mubr.f32.mxu0 0.0
        %1099 = vmatmul.mubr.f32.gmra.mxu0 %v952
        %v1100 = vpop.f32.mrf.mxu0
        %v1101 = vadd.f32 0.0, %v1100
        %v1102 = vpop.f32.mrf.mxu0
        %v1103 = vadd.f32 0.0, %v1102
        %1104 = vmatprep.mubr.f32.mxu0 0.0
        %1105 = vmatmul.mubr.f32.gmra.mxu0 %v955
        %v1106 = vpop.f32.mrf.mxu0
        %v1107 = vadd.f32 0.0, %v1106
        %v1108 = vpop.f32.mrf.mxu0
        %v1109 = vadd.f32 0.0, %v1108
        %1110 = vdwg.mxu0
        %1111 = vmatprep.subr.mxu0 0.0
        %1112 = vmatpush1.msra.mxu0 0.0
        %1113 = vmatprep.subr.mxu0 0.0
        %1114 = vmatpush1.msra.mxu0 0.0
        %1115 = vmatprep.subr.mxu0 0.0
        %1116 = vmatpush1.msra.mxu0 0.0
        %1117 = vmatprep.subr.mxu0 0.0
        %1118 = vmatpush1.msra.mxu0 0.0
        %1119 = vmatprep.subr.mxu0 0.0
        %1120 = vmatpush1.msra.mxu0 0.0
        %1121 = vmatprep.subr.mxu0 0.0
        %1122 = vmatpush1.msra.mxu0 0.0
        %1123 = vmatprep.subr.mxu0 0.0
        %1124 = vmatpush1.msra.mxu0 0.0
        %1125 = vmatprep.subr.mxu0 0.0
        %1126 = vmatpush1.msra.mxu0 0.0
        %1127 = vmatprep.subr.mxu0 0.0
        %1128 = vmatpush1.msra.mxu0 0.0
        %1129 = vmatprep.subr.mxu0 0.0
        %1130 = vmatpush1.msra.mxu0 0.0
        %1131 = vmatprep.subr.mxu0 %v947
        %1132 = vmatpush1.msra.mxu0 %v946
        %1133 = vmatprep.subr.mxu0 %v939
        %1134 = vmatpush1.msra.mxu0 %v938
        %1135 = vmatprep.subr.mxu0 %v931
        %1136 = vmatpush1.msra.mxu0 %v930
        %1137 = vmatprep.subr.mxu0 %v923
        %1138 = vmatpush1.msra.mxu0 %v922
        %1139 = vmatprep.subr.mxu0 %v915
        %1140 = vmatpush1.msra.mxu0 %v914
        %1141 = vmatprep.subr.mxu0 %v907
        %1142 = vmatpush1.msra.mxu0 %v906
        %1143 = vmatprep.subr.mxu0 0.0
        %1144 = vmatpush2.msra.mxu0 0.0
        %1145 = vmatprep.subr.mxu0 0.0
        %1146 = vmatpush2.msra.mxu0 0.0
        %1147 = vmatprep.subr.mxu0 0.0
        %1148 = vmatpush2.msra.mxu0 0.0
        %1149 = vmatprep.subr.mxu0 0.0
        %1150 = vmatpush2.msra.mxu0 0.0
        %1151 = vmatprep.subr.mxu0 0.0
        %1152 = vmatpush2.msra.mxu0 0.0
        %1153 = vmatprep.subr.mxu0 0.0
        %1154 = vmatpush2.msra.mxu0 0.0
        %1155 = vmatprep.subr.mxu0 0.0
        %1156 = vmatpush2.msra.mxu0 0.0
        %1157 = vmatprep.subr.mxu0 0.0
        %1158 = vmatpush2.msra.mxu0 0.0
        %1159 = vmatprep.subr.mxu0 0.0
        %1160 = vmatpush2.msra.mxu0 0.0
        %1161 = vmatprep.subr.mxu0 0.0
        %1162 = vmatpush2.msra.mxu0 0.0
        %1163 = vmatprep.subr.mxu0 0.0
        %1164 = vmatpush2.msra.mxu0 0.0
        %1165 = vmatprep.subr.mxu0 0.0
        %1166 = vmatpush2.msra.mxu0 0.0
        %1167 = vmatprep.subr.mxu0 0.0
        %1168 = vmatpush2.msra.mxu0 0.0
        %1169 = vmatprep.subr.mxu0 0.0
        %1170 = vmatpush2.msra.mxu0 0.0
        %1171 = vmatprep.subr.mxu0 0.0
        %1172 = vmatpush2.msra.mxu0 0.0
        %1173 = vmatprep.subr.mxu0 0.0
        %1174 = vmatpush2.msra.mxu0 0.0
        %1175 = vmatprep.mubr.f32.mxu0 0.0
        %1176 = vmatmul.mubr.f32.gmra.mxu0 %v952
        %v1177 = vpop.f32.mrf.mxu0
        %v1178 = vadd.f32 0.0, %v1177
        %v1179 = vpop.f32.mrf.mxu0
        %v1180 = vadd.f32 0.0, %v1179
        %1181 = vmatprep.mubr.f32.mxu0 0.0
        %1182 = vmatmul.mubr.f32.gmra.mxu0 %v955
        %v1183 = vpop.f32.mrf.mxu0
        %v1184 = vadd.f32 0.0, %v1183
        %v1185 = vpop.f32.mrf.mxu0
        %v1186 = vadd.f32 0.0, %v1185
        %1187 = vdwg.mxu0
        %1188 = vmatprep.subr.mxu0 0.0
        %1189 = vmatpush1.msra.mxu0 0.0
        %1190 = vmatprep.subr.mxu0 0.0
        %1191 = vmatpush1.msra.mxu0 0.0
        %1192 = vmatprep.subr.mxu0 0.0
        %1193 = vmatpush1.msra.mxu0 0.0
        %1194 = vmatprep.subr.mxu0 0.0
        %1195 = vmatpush1.msra.mxu0 0.0
        %1196 = vmatprep.subr.mxu0 0.0
        %1197 = vmatpush1.msra.mxu0 0.0
        %1198 = vmatprep.subr.mxu0 0.0
        %1199 = vmatpush1.msra.mxu0 0.0
        %1200 = vmatprep.subr.mxu0 0.0
        %1201 = vmatpush1.msra.mxu0 0.0
        %1202 = vmatprep.subr.mxu0 0.0
        %1203 = vmatpush1.msra.mxu0 0.0
        %1204 = vmatprep.subr.mxu0 0.0
        %1205 = vmatpush1.msra.mxu0 0.0
        %1206 = vmatprep.subr.mxu0 0.0
        %1207 = vmatpush1.msra.mxu0 0.0
        %1208 = vmatprep.subr.mxu0 %v949
        %1209 = vmatpush1.msra.mxu0 %v948
        %1210 = vmatprep.subr.mxu0 %v941
        %1211 = vmatpush1.msra.mxu0 %v940
        %1212 = vmatprep.subr.mxu0 %v933
        %1213 = vmatpush1.msra.mxu0 %v932
        %1214 = vmatprep.subr.mxu0 %v925
        %1215 = vmatpush1.msra.mxu0 %v924
        %1216 = vmatprep.subr.mxu0 %v917
        %1217 = vmatpush1.msra.mxu0 %v916
        %1218 = vmatprep.subr.mxu0 %v909
        %1219 = vmatpush1.msra.mxu0 %v908
        %1220 = vmatprep.subr.mxu0 0.0
        %1221 = vmatpush2.msra.mxu0 0.0
        %1222 = vmatprep.subr.mxu0 0.0
        %1223 = vmatpush2.msra.mxu0 0.0
        %1224 = vmatprep.subr.mxu0 0.0
        %1225 = vmatpush2.msra.mxu0 0.0
        %1226 = vmatprep.subr.mxu0 0.0
        %1227 = vmatpush2.msra.mxu0 0.0
        %1228 = vmatprep.subr.mxu0 0.0
        %1229 = vmatpush2.msra.mxu0 0.0
        %1230 = vmatprep.subr.mxu0 0.0
        %1231 = vmatpush2.msra.mxu0 0.0
        %1232 = vmatprep.subr.mxu0 0.0
        %1233 = vmatpush2.msra.mxu0 0.0
        %1234 = vmatprep.subr.mxu0 0.0
        %1235 = vmatpush2.msra.mxu0 0.0
        %1236 = vmatprep.subr.mxu0 0.0
        %1237 = vmatpush2.msra.mxu0 0.0
        %1238 = vmatprep.subr.mxu0 0.0
        %1239 = vmatpush2.msra.mxu0 0.0
        %1240 = vmatprep.subr.mxu0 0.0
        %1241 = vmatpush2.msra.mxu0 0.0
        %1242 = vmatprep.subr.mxu0 0.0
        %1243 = vmatpush2.msra.mxu0 0.0
        %1244 = vmatprep.subr.mxu0 0.0
        %1245 = vmatpush2.msra.mxu0 0.0
        %1246 = vmatprep.subr.mxu0 0.0
        %1247 = vmatpush2.msra.mxu0 0.0
        %1248 = vmatprep.subr.mxu0 0.0
        %1249 = vmatpush2.msra.mxu0 0.0
        %1250 = vmatprep.subr.mxu0 0.0
        %1251 = vmatpush2.msra.mxu0 0.0
        %1252 = vmatprep.mubr.f32.mxu0 0.0
        %1253 = vmatmul.mubr.f32.gmra.mxu0 %v952
        %v1254 = vpop.f32.mrf.mxu0
        %v1255 = vadd.f32 0.0, %v1254
        %v1256 = vpop.f32.mrf.mxu0
        %v1257 = vadd.f32 0.0, %v1256
        %1258 = vmatprep.mubr.f32.mxu0 0.0
        %1259 = vmatmul.mubr.f32.gmra.mxu0 %v955
        %v1260 = vpop.f32.mrf.mxu0
        %v1261 = vadd.f32 0.0, %v1260
        %v1262 = vpop.f32.mrf.mxu0
        %v1263 = vadd.f32 0.0, %v1262
        %1264 = vdwg.mxu0
        %v1265 = vmax.f32 %v1024, %v1101
        %v1266 = vmax.f32 %v1026, %v1103
        %v1267 = vmax.f32 %v1030, %v1107
        %v1268 = vmax.f32 %v1032, %v1109
        %v1269 = vmax.f32 %v1178, %v1255
        %v1270 = vmax.f32 %v1180, %v1257
        %v1271 = vmax.f32 %v1184, %v1261
        %v1272 = vmax.f32 %v1186, %v1263
        %v1273 = vmax.f32 %v1265, %v1269
        %v1274 = vmax.f32 %v1266, %v1270
        %v1275 = vmax.f32 %v1267, %v1271
        %v1276 = vmax.f32 %v1268, %v1272
        %v1277 = vld [vmem:[%s4] sm:$0xff]
        %v1278 = vld [vmem:[%s4 + $0x8] sm:$0xff]
        %s1279 = smul.f32 %s891, %s899
        %v1280 = vld [vmem:[%s3] sm:$0xff]
        %v1281 = vld [vmem:[%s3 + $0x8] sm:$0xff]
        %v1282 = vstv %s1279
        %v1283 = vmul.f32 %v1282, %v1280
        %v1284 = vmul.f32 %v1282, %v1281
        %v1285 = vsub.f32 %v1277, %v1283
        %v1286 = vsub.f32 %v1278, %v1284
        %v1287 = vstv %s899
        %v1288 = vmul.f32 %v1287, %v1273
        %v1289 = vmul.f32 %v1287, %v1274
        %v1290 = vmul.f32 %v1287, %v1275
        %v1291 = vmul.f32 %v1287, %v1276
        %1293 = vset.pattern.permute.xlu0 0
        %1294 = vperm.xlu0 %1293, %v1285
        %v1295 = vpop.permute.xlu0 %1294
        %1298 = vset.pattern.permute.xlu0 0
        %1299 = vperm.xlu0 %1298, %v1286
        %v1300 = vpop.permute.xlu0 %1299
        %v1302 = vadd.f32 %v1288, %v1295
        %v1303 = vadd.f32 %v1289, %v1295
        %v1304 = vadd.f32 %v1290, %v1300
        %v1305 = vadd.f32 %v1291, %v1300
        %v1306 = vmax.f32 %v1302, 0.0
        %v1307 = vmax.f32 %v1303, 0.0
        %v1308 = vmax.f32 %v1304, 0.0
        %v1309 = vmax.f32 %v1305, 0.0
        %v1310 = vld [vmem:[%s5] sm:$0xff]
        %v1311 = vld [vmem:[%s5 + $0x8] sm:$0xff]
        %v1312 = vld [vmem:[%s5 + $0x10] sm:$0xff]
        %v1313 = vld [vmem:[%s5 + $0x18] sm:$0xff]
        %v1314 = vld [vmem:[%s5 + $0x20] sm:$0xff]
        %v1315 = vld [vmem:[%s5 + $0x28] sm:$0xff]
        %v1316 = vld [vmem:[%s5 + $0x30] sm:$0xff]
        %v1317 = vld [vmem:[%s5 + $0x38] sm:$0xff]
        %v1318 = vlaneseq
        %v1319 = vshrl.u32 %v1318, 7
        %v1320 = vsub.s32 0, %v1319
        %v1321 = vrot.slane %v1306, %v1320
        %v1322 = vlaneseq
        %v1323 = vshrl.u32 %v1322, 7
        %v1324 = vsub.s32 0, %v1323
        %v1325 = vrot.slane %v1307, %v1324
        %v1326 = vmul.f32 %v1310, %v1321
        %v1327 = vmul.f32 %v1311, %v1325
        %v1328 = vmul.f32 %v1312, %v1321
        %v1329 = vmul.f32 %v1313, %v1325
        %v1330 = vmul.f32 %v1314, %v1321
        %v1331 = vmul.f32 %v1315, %v1325
        %v1332 = vmul.f32 %v1316, %v1321
        %v1333 = vmul.f32 %v1317, %v1325
        %v1334 = vadd.f32 %v1326, %v1327
        %1335 = vadd.xlane.f32.xlu0 %v1334
        %v1336 = vpop.xlane.xlu0 %1335
        %v1337 = vadd.f32 %v1328, %v1329
        %1338 = vadd.xlane.f32.xlu0 %v1337
        %v1339 = vpop.xlane.xlu0 %1338
        %v1340 = vadd.f32 %v1330, %v1331
        %1341 = vadd.xlane.f32.xlu0 %v1340
        %v1342 = vpop.xlane.xlu0 %1341
        %v1343 = vadd.f32 %v1332, %v1333
        %1344 = vadd.xlane.f32.xlu0 %v1343
        %v1345 = vpop.xlane.xlu0 %1344
        %s1346 = scalar_lea.vmem %s5, 64
        %v1347 = vld [vmem:[%s1346] sm:$0xff]
        %v1348 = vld [vmem:[%s1346 + $0x8] sm:$0xff]
        %v1349 = vld [vmem:[%s1346 + $0x10] sm:$0xff]
        %v1350 = vld [vmem:[%s1346 + $0x18] sm:$0xff]
        %v1351 = vld [vmem:[%s1346 + $0x20] sm:$0xff]
        %v1352 = vld [vmem:[%s1346 + $0x28] sm:$0xff]
        %v1353 = vld [vmem:[%s1346 + $0x30] sm:$0xff]
        %v1354 = vld [vmem:[%s1346 + $0x38] sm:$0xff]
        %v1355 = vlaneseq
        %v1356 = vshrl.u32 %v1355, 7
        %v1357 = vsub.s32 1, %v1356
        %v1358 = vrot.slane %v1306, %v1357
        %v1359 = vlaneseq
        %v1360 = vshrl.u32 %v1359, 7
        %v1361 = vsub.s32 1, %v1360
        %v1362 = vrot.slane %v1307, %v1361
        %v1363 = vmul.f32 %v1347, %v1358
        %v1364 = vmul.f32 %v1348, %v1362
        %v1365 = vmul.f32 %v1349, %v1358
        %v1366 = vmul.f32 %v1350, %v1362
        %v1367 = vmul.f32 %v1351, %v1358
        %v1368 = vmul.f32 %v1352, %v1362
        %v1369 = vmul.f32 %v1353, %v1358
        %v1370 = vmul.f32 %v1354, %v1362
        %v1371 = vadd.f32 %v1363, %v1364
        %1372 = vadd.xlane.f32.xlu0 %v1371
        %v1373 = vpop.xlane.xlu0 %1372
        %v1374 = vadd.f32 %v1365, %v1366
        %1375 = vadd.xlane.f32.xlu0 %v1374
        %v1376 = vpop.xlane.xlu0 %1375
        %v1377 = vadd.f32 %v1367, %v1368
        %1378 = vadd.xlane.f32.xlu0 %v1377
        %v1379 = vpop.xlane.xlu0 %1378
        %v1380 = vadd.f32 %v1369, %v1370
        %1381 = vadd.xlane.f32.xlu0 %v1380
        %v1382 = vpop.xlane.xlu0 %1381
        %s1383 = scalar_lea.vmem %s5, 128
        %v1384 = vld [vmem:[%s1383] sm:$0xff]
        %v1385 = vld [vmem:[%s1383 + $0x8] sm:$0xff]
        %v1386 = vld [vmem:[%s1383 + $0x10] sm:$0xff]
        %v1387 = vld [vmem:[%s1383 + $0x18] sm:$0xff]
        %v1388 = vld [vmem:[%s1383 + $0x20] sm:$0xff]
        %v1389 = vld [vmem:[%s1383 + $0x28] sm:$0xff]
        %v1390 = vld [vmem:[%s1383 + $0x30] sm:$0xff]
        %v1391 = vld [vmem:[%s1383 + $0x38] sm:$0xff]
        %v1392 = vlaneseq
        %v1393 = vshrl.u32 %v1392, 7
        %v1394 = vsub.s32 2, %v1393
        %v1395 = vrot.slane %v1306, %v1394
        %v1396 = vlaneseq
        %v1397 = vshrl.u32 %v1396, 7
        %v1398 = vsub.s32 2, %v1397
        %v1399 = vrot.slane %v1307, %v1398
        %v1400 = vmul.f32 %v1384, %v1395
        %v1401 = vmul.f32 %v1385, %v1399
        %v1402 = vmul.f32 %v1386, %v1395
        %v1403 = vmul.f32 %v1387, %v1399
        %v1404 = vmul.f32 %v1388, %v1395
        %v1405 = vmul.f32 %v1389, %v1399
        %v1406 = vmul.f32 %v1390, %v1395
        %v1407 = vmul.f32 %v1391, %v1399
        %v1408 = vadd.f32 %v1400, %v1401
        %1409 = vadd.xlane.f32.xlu0 %v1408
        %v1410 = vpop.xlane.xlu0 %1409
        %v1411 = vadd.f32 %v1402, %v1403
        %1412 = vadd.xlane.f32.xlu0 %v1411
        %v1413 = vpop.xlane.xlu0 %1412
        %v1414 = vadd.f32 %v1404, %v1405
        %1415 = vadd.xlane.f32.xlu0 %v1414
        %v1416 = vpop.xlane.xlu0 %1415
        %v1417 = vadd.f32 %v1406, %v1407
        %1418 = vadd.xlane.f32.xlu0 %v1417
        %v1419 = vpop.xlane.xlu0 %1418
        %s1420 = scalar_lea.vmem %s5, 192
        %v1421 = vld [vmem:[%s1420] sm:$0xff]
        %v1422 = vld [vmem:[%s1420 + $0x8] sm:$0xff]
        %v1423 = vld [vmem:[%s1420 + $0x10] sm:$0xff]
        %v1424 = vld [vmem:[%s1420 + $0x18] sm:$0xff]
        %v1425 = vld [vmem:[%s1420 + $0x20] sm:$0xff]
        %v1426 = vld [vmem:[%s1420 + $0x28] sm:$0xff]
        %v1427 = vld [vmem:[%s1420 + $0x30] sm:$0xff]
        %v1428 = vld [vmem:[%s1420 + $0x38] sm:$0xff]
        %v1429 = vlaneseq
        %v1430 = vshrl.u32 %v1429, 7
        %v1431 = vsub.s32 3, %v1430
        %v1432 = vrot.slane %v1306, %v1431
        %v1433 = vlaneseq
        %v1434 = vshrl.u32 %v1433, 7
        %v1435 = vsub.s32 3, %v1434
        %v1436 = vrot.slane %v1307, %v1435
        %v1437 = vmul.f32 %v1421, %v1432
        %v1438 = vmul.f32 %v1422, %v1436
        %v1439 = vmul.f32 %v1423, %v1432
        %v1440 = vmul.f32 %v1424, %v1436
        %v1441 = vmul.f32 %v1425, %v1432
        %v1442 = vmul.f32 %v1426, %v1436
        %v1443 = vmul.f32 %v1427, %v1432
        %v1444 = vmul.f32 %v1428, %v1436
        %v1445 = vadd.f32 %v1437, %v1438
        %1446 = vadd.xlane.f32.xlu0 %v1445
        %v1447 = vpop.xlane.xlu0 %1446
        %v1448 = vadd.f32 %v1439, %v1440
        %1449 = vadd.xlane.f32.xlu0 %v1448
        %v1450 = vpop.xlane.xlu0 %1449
        %v1451 = vadd.f32 %v1441, %v1442
        %1452 = vadd.xlane.f32.xlu0 %v1451
        %v1453 = vpop.xlane.xlu0 %1452
        %v1454 = vadd.f32 %v1443, %v1444
        %1455 = vadd.xlane.f32.xlu0 %v1454
        %v1456 = vpop.xlane.xlu0 %1455
        %s1457 = scalar_lea.vmem %s5, 256
        %v1458 = vld [vmem:[%s1457] sm:$0xff]
        %v1459 = vld [vmem:[%s1457 + $0x8] sm:$0xff]
        %v1460 = vld [vmem:[%s1457 + $0x10] sm:$0xff]
        %v1461 = vld [vmem:[%s1457 + $0x18] sm:$0xff]
        %v1462 = vld [vmem:[%s1457 + $0x20] sm:$0xff]
        %v1463 = vld [vmem:[%s1457 + $0x28] sm:$0xff]
        %v1464 = vld [vmem:[%s1457 + $0x30] sm:$0xff]
        %v1465 = vld [vmem:[%s1457 + $0x38] sm:$0xff]
        %v1466 = vlaneseq
        %v1467 = vshrl.u32 %v1466, 7
        %v1468 = vsub.s32 4, %v1467
        %v1469 = vrot.slane %v1306, %v1468
        %v1470 = vlaneseq
        %v1471 = vshrl.u32 %v1470, 7
        %v1472 = vsub.s32 4, %v1471
        %v1473 = vrot.slane %v1307, %v1472
        %v1474 = vmul.f32 %v1458, %v1469
        %v1475 = vmul.f32 %v1459, %v1473
        %v1476 = vmul.f32 %v1460, %v1469
        %v1477 = vmul.f32 %v1461, %v1473
        %v1478 = vmul.f32 %v1462, %v1469
        %v1479 = vmul.f32 %v1463, %v1473
        %v1480 = vmul.f32 %v1464, %v1469
        %v1481 = vmul.f32 %v1465, %v1473
        %v1482 = vadd.f32 %v1474, %v1475
        %1483 = vadd.xlane.f32.xlu0 %v1482
        %v1484 = vpop.xlane.xlu0 %1483
        %v1485 = vadd.f32 %v1476, %v1477
        %1486 = vadd.xlane.f32.xlu0 %v1485
        %v1487 = vpop.xlane.xlu0 %1486
        %v1488 = vadd.f32 %v1478, %v1479
        %1489 = vadd.xlane.f32.xlu0 %v1488
        %v1490 = vpop.xlane.xlu0 %1489
        %v1491 = vadd.f32 %v1480, %v1481
        %1492 = vadd.xlane.f32.xlu0 %v1491
        %v1493 = vpop.xlane.xlu0 %1492
        %s1494 = scalar_lea.vmem %s5, 320
        %v1495 = vld [vmem:[%s1494] sm:$0xff]
        %v1496 = vld [vmem:[%s1494 + $0x8] sm:$0xff]
        %v1497 = vld [vmem:[%s1494 + $0x10] sm:$0xff]
        %v1498 = vld [vmem:[%s1494 + $0x18] sm:$0xff]
        %v1499 = vld [vmem:[%s1494 + $0x20] sm:$0xff]
        %v1500 = vld [vmem:[%s1494 + $0x28] sm:$0xff]
        %v1501 = vld [vmem:[%s1494 + $0x30] sm:$0xff]
        %v1502 = vld [vmem:[%s1494 + $0x38] sm:$0xff]
        %v1503 = vlaneseq
        %v1504 = vshrl.u32 %v1503, 7
        %v1505 = vsub.s32 5, %v1504
        %v1506 = vrot.slane %v1306, %v1505
        %v1507 = vlaneseq
        %v1508 = vshrl.u32 %v1507, 7
        %v1509 = vsub.s32 5, %v1508
        %v1510 = vrot.slane %v1307, %v1509
        %v1511 = vmul.f32 %v1495, %v1506
        %v1512 = vmul.f32 %v1496, %v1510
        %v1513 = vmul.f32 %v1497, %v1506
        %v1514 = vmul.f32 %v1498, %v1510
        %v1515 = vmul.f32 %v1499, %v1506
        %v1516 = vmul.f32 %v1500, %v1510
        %v1517 = vmul.f32 %v1501, %v1506
        %v1518 = vmul.f32 %v1502, %v1510
        %v1519 = vadd.f32 %v1511, %v1512
        %1520 = vadd.xlane.f32.xlu0 %v1519
        %v1521 = vpop.xlane.xlu0 %1520
        %v1522 = vadd.f32 %v1513, %v1514
        %1523 = vadd.xlane.f32.xlu0 %v1522
        %v1524 = vpop.xlane.xlu0 %1523
        %v1525 = vadd.f32 %v1515, %v1516
        %1526 = vadd.xlane.f32.xlu0 %v1525
        %v1527 = vpop.xlane.xlu0 %1526
        %v1528 = vadd.f32 %v1517, %v1518
        %1529 = vadd.xlane.f32.xlu0 %v1528
        %v1530 = vpop.xlane.xlu0 %1529
        %s1531 = scalar_lea.vmem %s5, 384
        %v1532 = vld [vmem:[%s1531] sm:$0xff]
        %v1533 = vld [vmem:[%s1531 + $0x8] sm:$0xff]
        %v1534 = vld [vmem:[%s1531 + $0x10] sm:$0xff]
        %v1535 = vld [vmem:[%s1531 + $0x18] sm:$0xff]
        %v1536 = vld [vmem:[%s1531 + $0x20] sm:$0xff]
        %v1537 = vld [vmem:[%s1531 + $0x28] sm:$0xff]
        %v1538 = vld [vmem:[%s1531 + $0x30] sm:$0xff]
        %v1539 = vld [vmem:[%s1531 + $0x38] sm:$0xff]
        %v1540 = vlaneseq
        %v1541 = vshrl.u32 %v1540, 7
        %v1542 = vsub.s32 6, %v1541
        %v1543 = vrot.slane %v1306, %v1542
        %v1544 = vlaneseq
        %v1545 = vshrl.u32 %v1544, 7
        %v1546 = vsub.s32 6, %v1545
        %v1547 = vrot.slane %v1307, %v1546
        %v1548 = vmul.f32 %v1532, %v1543
        %v1549 = vmul.f32 %v1533, %v1547
        %v1550 = vmul.f32 %v1534, %v1543
        %v1551 = vmul.f32 %v1535, %v1547
        %v1552 = vmul.f32 %v1536, %v1543
        %v1553 = vmul.f32 %v1537, %v1547
        %v1554 = vmul.f32 %v1538, %v1543
        %v1555 = vmul.f32 %v1539, %v1547
        %v1556 = vadd.f32 %v1548, %v1549
        %1557 = vadd.xlane.f32.xlu0 %v1556
        %v1558 = vpop.xlane.xlu0 %1557
        %v1559 = vadd.f32 %v1550, %v1551
        %1560 = vadd.xlane.f32.xlu0 %v1559
        %v1561 = vpop.xlane.xlu0 %1560
        %v1562 = vadd.f32 %v1552, %v1553
        %1563 = vadd.xlane.f32.xlu0 %v1562
        %v1564 = vpop.xlane.xlu0 %1563
        %v1565 = vadd.f32 %v1554, %v1555
        %1566 = vadd.xlane.f32.xlu0 %v1565
        %v1567 = vpop.xlane.xlu0 %1566
        %s1568 = scalar_lea.vmem %s5, 448
        %v1569 = vld [vmem:[%s1568] sm:$0xff]
        %v1570 = vld [vmem:[%s1568 + $0x8] sm:$0xff]
        %v1571 = vld [vmem:[%s1568 + $0x10] sm:$0xff]
        %v1572 = vld [vmem:[%s1568 + $0x18] sm:$0xff]
        %v1573 = vld [vmem:[%s1568 + $0x20] sm:$0xff]
        %v1574 = vld [vmem:[%s1568 + $0x28] sm:$0xff]
        %v1575 = vld [vmem:[%s1568 + $0x30] sm:$0xff]
        %v1576 = vld [vmem:[%s1568 + $0x38] sm:$0xff]
        %v1577 = vlaneseq
        %v1578 = vshrl.u32 %v1577, 7
        %v1579 = vsub.s32 7, %v1578
        %v1580 = vrot.slane %v1306, %v1579
        %v1581 = vlaneseq
        %v1582 = vshrl.u32 %v1581, 7
        %v1583 = vsub.s32 7, %v1582
        %v1584 = vrot.slane %v1307, %v1583
        %v1585 = vmul.f32 %v1569, %v1580
        %v1586 = vmul.f32 %v1570, %v1584
        %v1587 = vmul.f32 %v1571, %v1580
        %v1588 = vmul.f32 %v1572, %v1584
        %v1589 = vmul.f32 %v1573, %v1580
        %v1590 = vmul.f32 %v1574, %v1584
        %v1591 = vmul.f32 %v1575, %v1580
        %v1592 = vmul.f32 %v1576, %v1584
        %v1593 = vadd.f32 %v1585, %v1586
        %1594 = vadd.xlane.f32.xlu0 %v1593
        %v1595 = vpop.xlane.xlu0 %1594
        %v1596 = vadd.f32 %v1587, %v1588
        %1597 = vadd.xlane.f32.xlu0 %v1596
        %v1598 = vpop.xlane.xlu0 %1597
        %v1599 = vadd.f32 %v1589, %v1590
        %1600 = vadd.xlane.f32.xlu0 %v1599
        %v1601 = vpop.xlane.xlu0 %1600
        %v1602 = vadd.f32 %v1591, %v1592
        %1603 = vadd.xlane.f32.xlu0 %v1602
        %v1604 = vpop.xlane.xlu0 %1603
        %s1605 = scalar_lea.vmem %s5, 512
        %v1606 = vld [vmem:[%s1605] sm:$0xff]
        %v1607 = vld [vmem:[%s1605 + $0x8] sm:$0xff]
        %v1608 = vld [vmem:[%s1605 + $0x10] sm:$0xff]
        %v1609 = vld [vmem:[%s1605 + $0x18] sm:$0xff]
        %v1610 = vld [vmem:[%s1605 + $0x20] sm:$0xff]
        %v1611 = vld [vmem:[%s1605 + $0x28] sm:$0xff]
        %v1612 = vld [vmem:[%s1605 + $0x30] sm:$0xff]
        %v1613 = vld [vmem:[%s1605 + $0x38] sm:$0xff]
        %v1614 = vlaneseq
        %v1615 = vshrl.u32 %v1614, 7
        %v1616 = vsub.s32 0, %v1615
        %v1617 = vrot.slane %v1308, %v1616
        %v1618 = vlaneseq
        %v1619 = vshrl.u32 %v1618, 7
        %v1620 = vsub.s32 0, %v1619
        %v1621 = vrot.slane %v1309, %v1620
        %v1622 = vmul.f32 %v1606, %v1617
        %v1623 = vmul.f32 %v1607, %v1621
        %v1624 = vmul.f32 %v1608, %v1617
        %v1625 = vmul.f32 %v1609, %v1621
        %v1626 = vmul.f32 %v1610, %v1617
        %v1627 = vmul.f32 %v1611, %v1621
        %v1628 = vmul.f32 %v1612, %v1617
        %v1629 = vmul.f32 %v1613, %v1621
        %v1630 = vadd.f32 %v1622, %v1623
        %1631 = vadd.xlane.f32.xlu0 %v1630
        %v1632 = vpop.xlane.xlu0 %1631
        %v1633 = vadd.f32 %v1624, %v1625
        %1634 = vadd.xlane.f32.xlu0 %v1633
        %v1635 = vpop.xlane.xlu0 %1634
        %v1636 = vadd.f32 %v1626, %v1627
        %1637 = vadd.xlane.f32.xlu0 %v1636
        %v1638 = vpop.xlane.xlu0 %1637
        %v1639 = vadd.f32 %v1628, %v1629
        %1640 = vadd.xlane.f32.xlu0 %v1639
        %v1641 = vpop.xlane.xlu0 %1640
        %s1642 = scalar_lea.vmem %s5, 576
        %v1643 = vld [vmem:[%s1642] sm:$0xff]
        %v1644 = vld [vmem:[%s1642 + $0x8] sm:$0xff]
        %v1645 = vld [vmem:[%s1642 + $0x10] sm:$0xff]
        %v1646 = vld [vmem:[%s1642 + $0x18] sm:$0xff]
        %v1647 = vld [vmem:[%s1642 + $0x20] sm:$0xff]
        %v1648 = vld [vmem:[%s1642 + $0x28] sm:$0xff]
        %v1649 = vld [vmem:[%s1642 + $0x30] sm:$0xff]
        %v1650 = vld [vmem:[%s1642 + $0x38] sm:$0xff]
        %v1651 = vlaneseq
        %v1652 = vshrl.u32 %v1651, 7
        %v1653 = vsub.s32 1, %v1652
        %v1654 = vrot.slane %v1308, %v1653
        %v1655 = vlaneseq
        %v1656 = vshrl.u32 %v1655, 7
        %v1657 = vsub.s32 1, %v1656
        %v1658 = vrot.slane %v1309, %v1657
        %v1659 = vmul.f32 %v1643, %v1654
        %v1660 = vmul.f32 %v1644, %v1658
        %v1661 = vmul.f32 %v1645, %v1654
        %v1662 = vmul.f32 %v1646, %v1658
        %v1663 = vmul.f32 %v1647, %v1654
        %v1664 = vmul.f32 %v1648, %v1658
        %v1665 = vmul.f32 %v1649, %v1654
        %v1666 = vmul.f32 %v1650, %v1658
        %v1667 = vadd.f32 %v1659, %v1660
        %1668 = vadd.xlane.f32.xlu0 %v1667
        %v1669 = vpop.xlane.xlu0 %1668
        %v1670 = vadd.f32 %v1661, %v1662
        %1671 = vadd.xlane.f32.xlu0 %v1670
        %v1672 = vpop.xlane.xlu0 %1671
        %v1673 = vadd.f32 %v1663, %v1664
        %1674 = vadd.xlane.f32.xlu0 %v1673
        %v1675 = vpop.xlane.xlu0 %1674
        %v1676 = vadd.f32 %v1665, %v1666
        %1677 = vadd.xlane.f32.xlu0 %v1676
        %v1678 = vpop.xlane.xlu0 %1677
        %s1679 = scalar_lea.vmem %s5, 640
        %v1680 = vld [vmem:[%s1679] sm:$0xff]
        %v1681 = vld [vmem:[%s1679 + $0x8] sm:$0xff]
        %v1682 = vld [vmem:[%s1679 + $0x10] sm:$0xff]
        %v1683 = vld [vmem:[%s1679 + $0x18] sm:$0xff]
        %v1684 = vld [vmem:[%s1679 + $0x20] sm:$0xff]
        %v1685 = vld [vmem:[%s1679 + $0x28] sm:$0xff]
        %v1686 = vld [vmem:[%s1679 + $0x30] sm:$0xff]
        %v1687 = vld [vmem:[%s1679 + $0x38] sm:$0xff]
        %v1688 = vlaneseq
        %v1689 = vshrl.u32 %v1688, 7
        %v1690 = vsub.s32 2, %v1689
        %v1691 = vrot.slane %v1308, %v1690
        %v1692 = vlaneseq
        %v1693 = vshrl.u32 %v1692, 7
        %v1694 = vsub.s32 2, %v1693
        %v1695 = vrot.slane %v1309, %v1694
        %v1696 = vmul.f32 %v1680, %v1691
        %v1697 = vmul.f32 %v1681, %v1695
        %v1698 = vmul.f32 %v1682, %v1691
        %v1699 = vmul.f32 %v1683, %v1695
        %v1700 = vmul.f32 %v1684, %v1691
        %v1701 = vmul.f32 %v1685, %v1695
        %v1702 = vmul.f32 %v1686, %v1691
        %v1703 = vmul.f32 %v1687, %v1695
        %v1704 = vadd.f32 %v1696, %v1697
        %1705 = vadd.xlane.f32.xlu0 %v1704
        %v1706 = vpop.xlane.xlu0 %1705
        %v1707 = vadd.f32 %v1698, %v1699
        %1708 = vadd.xlane.f32.xlu0 %v1707
        %v1709 = vpop.xlane.xlu0 %1708
        %v1710 = vadd.f32 %v1700, %v1701
        %1711 = vadd.xlane.f32.xlu0 %v1710
        %v1712 = vpop.xlane.xlu0 %1711
        %v1713 = vadd.f32 %v1702, %v1703
        %1714 = vadd.xlane.f32.xlu0 %v1713
        %v1715 = vpop.xlane.xlu0 %1714
        %s1716 = scalar_lea.vmem %s5, 704
        %v1717 = vld [vmem:[%s1716] sm:$0xff]
        %v1718 = vld [vmem:[%s1716 + $0x8] sm:$0xff]
        %v1719 = vld [vmem:[%s1716 + $0x10] sm:$0xff]
        %v1720 = vld [vmem:[%s1716 + $0x18] sm:$0xff]
        %v1721 = vld [vmem:[%s1716 + $0x20] sm:$0xff]
        %v1722 = vld [vmem:[%s1716 + $0x28] sm:$0xff]
        %v1723 = vld [vmem:[%s1716 + $0x30] sm:$0xff]
        %v1724 = vld [vmem:[%s1716 + $0x38] sm:$0xff]
        %v1725 = vlaneseq
        %v1726 = vshrl.u32 %v1725, 7
        %v1727 = vsub.s32 3, %v1726
        %v1728 = vrot.slane %v1308, %v1727
        %v1729 = vlaneseq
        %v1730 = vshrl.u32 %v1729, 7
        %v1731 = vsub.s32 3, %v1730
        %v1732 = vrot.slane %v1309, %v1731
        %v1733 = vmul.f32 %v1717, %v1728
        %v1734 = vmul.f32 %v1718, %v1732
        %v1735 = vmul.f32 %v1719, %v1728
        %v1736 = vmul.f32 %v1720, %v1732
        %v1737 = vmul.f32 %v1721, %v1728
        %v1738 = vmul.f32 %v1722, %v1732
        %v1739 = vmul.f32 %v1723, %v1728
        %v1740 = vmul.f32 %v1724, %v1732
        %v1741 = vadd.f32 %v1733, %v1734
        %1742 = vadd.xlane.f32.xlu0 %v1741
        %v1743 = vpop.xlane.xlu0 %1742
        %v1744 = vadd.f32 %v1735, %v1736
        %1745 = vadd.xlane.f32.xlu0 %v1744
        %v1746 = vpop.xlane.xlu0 %1745
        %v1747 = vadd.f32 %v1737, %v1738
        %1748 = vadd.xlane.f32.xlu0 %v1747
        %v1749 = vpop.xlane.xlu0 %1748
        %v1750 = vadd.f32 %v1739, %v1740
        %1751 = vadd.xlane.f32.xlu0 %v1750
        %v1752 = vpop.xlane.xlu0 %1751
        %s1753 = scalar_lea.vmem %s5, 768
        %v1754 = vld [vmem:[%s1753] sm:$0xff]
        %v1755 = vld [vmem:[%s1753 + $0x8] sm:$0xff]
        %v1756 = vld [vmem:[%s1753 + $0x10] sm:$0xff]
        %v1757 = vld [vmem:[%s1753 + $0x18] sm:$0xff]
        %v1758 = vld [vmem:[%s1753 + $0x20] sm:$0xff]
        %v1759 = vld [vmem:[%s1753 + $0x28] sm:$0xff]
        %v1760 = vld [vmem:[%s1753 + $0x30] sm:$0xff]
        %v1761 = vld [vmem:[%s1753 + $0x38] sm:$0xff]
        %v1762 = vlaneseq
        %v1763 = vshrl.u32 %v1762, 7
        %v1764 = vsub.s32 4, %v1763
        %v1765 = vrot.slane %v1308, %v1764
        %v1766 = vlaneseq
        %v1767 = vshrl.u32 %v1766, 7
        %v1768 = vsub.s32 4, %v1767
        %v1769 = vrot.slane %v1309, %v1768
        %v1770 = vmul.f32 %v1754, %v1765
        %v1771 = vmul.f32 %v1755, %v1769
        %v1772 = vmul.f32 %v1756, %v1765
        %v1773 = vmul.f32 %v1757, %v1769
        %v1774 = vmul.f32 %v1758, %v1765
        %v1775 = vmul.f32 %v1759, %v1769
        %v1776 = vmul.f32 %v1760, %v1765
        %v1777 = vmul.f32 %v1761, %v1769
        %v1778 = vadd.f32 %v1770, %v1771
        %1779 = vadd.xlane.f32.xlu0 %v1778
        %v1780 = vpop.xlane.xlu0 %1779
        %v1781 = vadd.f32 %v1772, %v1773
        %1782 = vadd.xlane.f32.xlu0 %v1781
        %v1783 = vpop.xlane.xlu0 %1782
        %v1784 = vadd.f32 %v1774, %v1775
        %1785 = vadd.xlane.f32.xlu0 %v1784
        %v1786 = vpop.xlane.xlu0 %1785
        %v1787 = vadd.f32 %v1776, %v1777
        %1788 = vadd.xlane.f32.xlu0 %v1787
        %v1789 = vpop.xlane.xlu0 %1788
        %s1790 = scalar_lea.vmem %s5, 832
        %v1791 = vld [vmem:[%s1790] sm:$0xff]
        %v1792 = vld [vmem:[%s1790 + $0x8] sm:$0xff]
        %v1793 = vld [vmem:[%s1790 + $0x10] sm:$0xff]
        %v1794 = vld [vmem:[%s1790 + $0x18] sm:$0xff]
        %v1795 = vld [vmem:[%s1790 + $0x20] sm:$0xff]
        %v1796 = vld [vmem:[%s1790 + $0x28] sm:$0xff]
        %v1797 = vld [vmem:[%s1790 + $0x30] sm:$0xff]
        %v1798 = vld [vmem:[%s1790 + $0x38] sm:$0xff]
        %v1799 = vlaneseq
        %v1800 = vshrl.u32 %v1799, 7
        %v1801 = vsub.s32 5, %v1800
        %v1802 = vrot.slane %v1308, %v1801
        %v1803 = vlaneseq
        %v1804 = vshrl.u32 %v1803, 7
        %v1805 = vsub.s32 5, %v1804
        %v1806 = vrot.slane %v1309, %v1805
        %v1807 = vmul.f32 %v1791, %v1802
        %v1808 = vmul.f32 %v1792, %v1806
        %v1809 = vmul.f32 %v1793, %v1802
        %v1810 = vmul.f32 %v1794, %v1806
        %v1811 = vmul.f32 %v1795, %v1802
        %v1812 = vmul.f32 %v1796, %v1806
        %v1813 = vmul.f32 %v1797, %v1802
        %v1814 = vmul.f32 %v1798, %v1806
        %v1815 = vadd.f32 %v1807, %v1808
        %1816 = vadd.xlane.f32.xlu0 %v1815
        %v1817 = vpop.xlane.xlu0 %1816
        %v1818 = vadd.f32 %v1809, %v1810
        %1819 = vadd.xlane.f32.xlu0 %v1818
        %v1820 = vpop.xlane.xlu0 %1819
        %v1821 = vadd.f32 %v1811, %v1812
        %1822 = vadd.xlane.f32.xlu0 %v1821
        %v1823 = vpop.xlane.xlu0 %1822
        %v1824 = vadd.f32 %v1813, %v1814
        %1825 = vadd.xlane.f32.xlu0 %v1824
        %v1826 = vpop.xlane.xlu0 %1825
        %s1827 = scalar_lea.vmem %s5, 896
        %v1828 = vld [vmem:[%s1827] sm:$0xff]
        %v1829 = vld [vmem:[%s1827 + $0x8] sm:$0xff]
        %v1830 = vld [vmem:[%s1827 + $0x10] sm:$0xff]
        %v1831 = vld [vmem:[%s1827 + $0x18] sm:$0xff]
        %v1832 = vld [vmem:[%s1827 + $0x20] sm:$0xff]
        %v1833 = vld [vmem:[%s1827 + $0x28] sm:$0xff]
        %v1834 = vld [vmem:[%s1827 + $0x30] sm:$0xff]
        %v1835 = vld [vmem:[%s1827 + $0x38] sm:$0xff]
        %v1836 = vlaneseq
        %v1837 = vshrl.u32 %v1836, 7
        %v1838 = vsub.s32 6, %v1837
        %v1839 = vrot.slane %v1308, %v1838
        %v1840 = vlaneseq
        %v1841 = vshrl.u32 %v1840, 7
        %v1842 = vsub.s32 6, %v1841
        %v1843 = vrot.slane %v1309, %v1842
        %v1844 = vmul.f32 %v1828, %v1839
        %v1845 = vmul.f32 %v1829, %v1843
        %v1846 = vmul.f32 %v1830, %v1839
        %v1847 = vmul.f32 %v1831, %v1843
        %v1848 = vmul.f32 %v1832, %v1839
        %v1849 = vmul.f32 %v1833, %v1843
        %v1850 = vmul.f32 %v1834, %v1839
        %v1851 = vmul.f32 %v1835, %v1843
        %v1852 = vadd.f32 %v1844, %v1845
        %1853 = vadd.xlane.f32.xlu0 %v1852
        %v1854 = vpop.xlane.xlu0 %1853
        %v1855 = vadd.f32 %v1846, %v1847
        %1856 = vadd.xlane.f32.xlu0 %v1855
        %v1857 = vpop.xlane.xlu0 %1856
        %v1858 = vadd.f32 %v1848, %v1849
        %1859 = vadd.xlane.f32.xlu0 %v1858
        %v1860 = vpop.xlane.xlu0 %1859
        %v1861 = vadd.f32 %v1850, %v1851
        %1862 = vadd.xlane.f32.xlu0 %v1861
        %v1863 = vpop.xlane.xlu0 %1862
        %s1864 = scalar_lea.vmem %s5, 960
        %v1865 = vld [vmem:[%s1864] sm:$0xff]
        %v1866 = vld [vmem:[%s1864 + $0x8] sm:$0xff]
        %v1867 = vld [vmem:[%s1864 + $0x10] sm:$0xff]
        %v1868 = vld [vmem:[%s1864 + $0x18] sm:$0xff]
        %v1869 = vld [vmem:[%s1864 + $0x20] sm:$0xff]
        %v1870 = vld [vmem:[%s1864 + $0x28] sm:$0xff]
        %v1871 = vld [vmem:[%s1864 + $0x30] sm:$0xff]
        %v1872 = vld [vmem:[%s1864 + $0x38] sm:$0xff]
        %v1873 = vlaneseq
        %v1874 = vshrl.u32 %v1873, 7
        %v1875 = vsub.s32 7, %v1874
        %v1876 = vrot.slane %v1308, %v1875
        %v1877 = vlaneseq
        %v1878 = vshrl.u32 %v1877, 7
        %v1879 = vsub.s32 7, %v1878
        %v1880 = vrot.slane %v1309, %v1879
        %v1881 = vmul.f32 %v1865, %v1876
        %v1882 = vmul.f32 %v1866, %v1880
        %v1883 = vmul.f32 %v1867, %v1876
        %v1884 = vmul.f32 %v1868, %v1880
        %v1885 = vmul.f32 %v1869, %v1876
        %v1886 = vmul.f32 %v1870, %v1880
        %v1887 = vmul.f32 %v1871, %v1876
        %v1888 = vmul.f32 %v1872, %v1880
        %v1889 = vadd.f32 %v1881, %v1882
        %1890 = vadd.xlane.f32.xlu0 %v1889
        %v1891 = vpop.xlane.xlu0 %1890
        %v1892 = vadd.f32 %v1883, %v1884
        %1893 = vadd.xlane.f32.xlu0 %v1892
        %v1894 = vpop.xlane.xlu0 %1893
        %v1895 = vadd.f32 %v1885, %v1886
        %1896 = vadd.xlane.f32.xlu0 %v1895
        %v1897 = vpop.xlane.xlu0 %1896
        %v1898 = vadd.f32 %v1887, %v1888
        %1899 = vadd.xlane.f32.xlu0 %v1898
        %v1900 = vpop.xlane.xlu0 %1899
        %v1901 = vadd.f32 %v1336, %v1373
        %v1902 = vadd.f32 %v1339, %v1376
        %v1903 = vadd.f32 %v1342, %v1379
        %v1904 = vadd.f32 %v1345, %v1382
        %v1905 = vadd.f32 %v1410, %v1447
        %v1906 = vadd.f32 %v1413, %v1450
        %v1907 = vadd.f32 %v1416, %v1453
        %v1908 = vadd.f32 %v1419, %v1456
        %v1909 = vadd.f32 %v1484, %v1521
        %v1910 = vadd.f32 %v1487, %v1524
        %v1911 = vadd.f32 %v1490, %v1527
        %v1912 = vadd.f32 %v1493, %v1530
        %v1913 = vadd.f32 %v1558, %v1595
        %v1914 = vadd.f32 %v1561, %v1598
        %v1915 = vadd.f32 %v1564, %v1601
        %v1916 = vadd.f32 %v1567, %v1604
        %v1917 = vadd.f32 %v1632, %v1669
        %v1918 = vadd.f32 %v1635, %v1672
        %v1919 = vadd.f32 %v1638, %v1675
        %v1920 = vadd.f32 %v1641, %v1678
        %v1921 = vadd.f32 %v1706, %v1743
        %v1922 = vadd.f32 %v1709, %v1746
        %v1923 = vadd.f32 %v1712, %v1749
        %v1924 = vadd.f32 %v1715, %v1752
        %v1925 = vadd.f32 %v1780, %v1817
        %v1926 = vadd.f32 %v1783, %v1820
        %v1927 = vadd.f32 %v1786, %v1823
        %v1928 = vadd.f32 %v1789, %v1826
        %v1929 = vadd.f32 %v1854, %v1891
        %v1930 = vadd.f32 %v1857, %v1894
        %v1931 = vadd.f32 %v1860, %v1897
        %v1932 = vadd.f32 %v1863, %v1900
        %v1933 = vadd.f32 %v1901, %v1905
        %v1934 = vadd.f32 %v1902, %v1906
        %v1935 = vadd.f32 %v1903, %v1907
        %v1936 = vadd.f32 %v1904, %v1908
        %v1937 = vadd.f32 %v1909, %v1913
        %v1938 = vadd.f32 %v1910, %v1914
        %v1939 = vadd.f32 %v1911, %v1915
        %v1940 = vadd.f32 %v1912, %v1916
        %v1941 = vadd.f32 %v1917, %v1921
        %v1942 = vadd.f32 %v1918, %v1922
        %v1943 = vadd.f32 %v1919, %v1923
        %v1944 = vadd.f32 %v1920, %v1924
        %v1945 = vadd.f32 %v1925, %v1929
        %v1946 = vadd.f32 %v1926, %v1930
        %v1947 = vadd.f32 %v1927, %v1931
        %v1948 = vadd.f32 %v1928, %v1932
        %v1949 = vadd.f32 %v1933, %v1937
        %v1950 = vadd.f32 %v1934, %v1938
        %v1951 = vadd.f32 %v1935, %v1939
        %v1952 = vadd.f32 %v1936, %v1940
        %v1953 = vadd.f32 %v1941, %v1945
        %v1954 = vadd.f32 %v1942, %v1946
        %v1955 = vadd.f32 %v1943, %v1947
        %v1956 = vadd.f32 %v1944, %v1948
        %v1957 = vadd.f32 %v1949, %v1953
        %v1958 = vadd.f32 %v1950, %v1954
        %v1959 = vadd.f32 %v1951, %v1955
        %v1960 = vadd.f32 %v1952, %v1956
        %v1961 = vld [vmem:[%s6] sm:$0xff]
        %v1962 = vld [vmem:[%s6 + $0x8] sm:$0xff]
        %v1963 = vld [vmem:[%s6 + $0x10] sm:$0xff]
        %v1964 = vld [vmem:[%s6 + $0x18] sm:$0xff]
        %v1965 = vadd.f32 %v1957, %v1961
        %v1966 = vadd.f32 %v1958, %v1962
        %v1967 = vadd.f32 %v1959, %v1963
        %v1968 = vadd.f32 %v1960, %v1964
        %v1969 = vmax.f32 %v1965, 0.0
        %v1970 = vmax.f32 %v1966, 0.0
        %v1971 = vmax.f32 %v1967, 0.0
        %v1972 = vmax.f32 %v1968, 0.0
        %v1973 = vld [vmem:[%s7] sm:$0xff]
        %v1974 = vld [vmem:[%s7 + $0x8] sm:$0xff]
        %v1975 = vld [vmem:[%s8] sm:$0xff]
        %v1976 = vld [vmem:[%s8 + $0x8] sm:$0xff]
        %vm1977 = vcmask 261120
        %v1979 = vsel %vm1977, %v1973, 0
        %v1982 = vsel %vm1977, %v1974, 0
        %1984 = vmatprep.subr.mxu0 0.0
        %1985 = vmatpush1.msra.mxu0 0.0
        %1986 = vmatprep.subr.mxu0 0.0
        %1987 = vmatpush1.msra.mxu0 0.0
        %1988 = vmatprep.subr.mxu0 0.0
        %1989 = vmatpush1.msra.mxu0 0.0
        %1990 = vmatprep.subr.mxu0 0.0
        %1991 = vmatpush1.msra.mxu0 0.0
        %1992 = vmatprep.subr.mxu0 0.0
        %1993 = vmatpush1.msra.mxu0 0.0
        %1994 = vmatprep.subr.mxu0 0.0
        %1995 = vmatpush1.msra.mxu0 0.0
        %1996 = vmatprep.subr.mxu0 0.0
        %1997 = vmatpush1.msra.mxu0 0.0
        %1998 = vmatprep.subr.mxu0 0.0
        %1999 = vmatpush1.msra.mxu0 0.0
        %2000 = vmatprep.subr.mxu0 0.0
        %2001 = vmatpush1.msra.mxu0 0.0
        %2002 = vmatprep.subr.mxu0 0.0
        %2003 = vmatpush1.msra.mxu0 0.0
        %2004 = vmatprep.subr.mxu0 0.0
        %2005 = vmatpush1.msra.mxu0 0.0
        %2006 = vmatprep.subr.mxu0 0.0
        %2007 = vmatpush1.msra.mxu0 0.0
        %2008 = vmatprep.subr.mxu0 0.0
        %2009 = vmatpush1.msra.mxu0 %v1972
        %2010 = vmatprep.subr.mxu0 0.0
        %2011 = vmatpush1.msra.mxu0 %v1971
        %2012 = vmatprep.subr.mxu0 0.0
        %2013 = vmatpush1.msra.mxu0 %v1970
        %2014 = vmatprep.subr.mxu0 0.0
        %2015 = vmatpush1.msra.mxu0 %v1969
        %2016 = vmatprep.subr.mxu0 0.0
        %2017 = vmatpush2.msra.mxu0 0.0
        %2018 = vmatprep.subr.mxu0 0.0
        %2019 = vmatpush2.msra.mxu0 0.0
        %2020 = vmatprep.subr.mxu0 0.0
        %2021 = vmatpush2.msra.mxu0 0.0
        %2022 = vmatprep.subr.mxu0 0.0
        %2023 = vmatpush2.msra.mxu0 0.0
        %2024 = vmatprep.subr.mxu0 0.0
        %2025 = vmatpush2.msra.mxu0 0.0
        %2026 = vmatprep.subr.mxu0 0.0
        %2027 = vmatpush2.msra.mxu0 0.0
        %2028 = vmatprep.subr.mxu0 0.0
        %2029 = vmatpush2.msra.mxu0 0.0
        %2030 = vmatprep.subr.mxu0 0.0
        %2031 = vmatpush2.msra.mxu0 0.0
        %2032 = vmatprep.subr.mxu0 0.0
        %2033 = vmatpush2.msra.mxu0 0.0
        %2034 = vmatprep.subr.mxu0 0.0
        %2035 = vmatpush2.msra.mxu0 0.0
        %2036 = vmatprep.subr.mxu0 0.0
        %2037 = vmatpush2.msra.mxu0 0.0
        %2038 = vmatprep.subr.mxu0 0.0
        %2039 = vmatpush2.msra.mxu0 0.0
        %2040 = vmatprep.subr.mxu0 0.0
        %2041 = vmatpush2.msra.mxu0 0.0
        %2042 = vmatprep.subr.mxu0 0.0
        %2043 = vmatpush2.msra.mxu0 0.0
        %2044 = vmatprep.subr.mxu0 0.0
        %2045 = vmatpush2.msra.mxu0 0.0
        %2046 = vmatprep.subr.mxu0 0.0
        %2047 = vmatpush2.msra.mxu0 0.0
        %2048 = vmatprep.mubr.f32.mxu0 0.0
        %2049 = vmatmul.mubr.f32.gmra.mxu0 %v1979
        %v2050 = vpop.f32.mrf.mxu0
        %v2051 = vadd.f32 %v1975, %v2050
        %v2052 = vpop.f32.mrf.mxu0
        %2053 = vmatprep.mubr.f32.mxu0 0.0
        %2054 = vmatmul.mubr.f32.gmra.mxu0 %v1982
        %v2055 = vpop.f32.mrf.mxu0
        %v2056 = vadd.f32 %v1976, %v2055
        %v2057 = vpop.f32.mrf.mxu0
        %2058 = vdwg.mxu0
        %v2059 = vmax.f32 %v2051, 0.0
        %v2060 = vmax.f32 %v2056, 0.0
        %v2061 = vld [vmem:[%s9] sm:$0xf]
        %v2062 = vld [vmem:[%s10] sm:$0xf]
        %vm2063 = vcmask 130048
        %v2065 = vsel %vm2063, %v2061, 0
        %2067 = vmatprep.subr.mxu0 0.0
        %2068 = vmatpush1.msra.mxu0 0.0
        %2069 = vmatprep.subr.mxu0 0.0
        %2070 = vmatpush1.msra.mxu0 0.0
        %2071 = vmatprep.subr.mxu0 0.0
        %2072 = vmatpush1.msra.mxu0 0.0
        %2073 = vmatprep.subr.mxu0 0.0
        %2074 = vmatpush1.msra.mxu0 0.0
        %2075 = vmatprep.subr.mxu0 0.0
        %2076 = vmatpush1.msra.mxu0 0.0
        %2077 = vmatprep.subr.mxu0 0.0
        %2078 = vmatpush1.msra.mxu0 0.0
        %2079 = vmatprep.subr.mxu0 0.0
        %2080 = vmatpush1.msra.mxu0 0.0
        %2081 = vmatprep.subr.mxu0 0.0
        %2082 = vmatpush1.msra.mxu0 0.0
        %2083 = vmatprep.subr.mxu0 0.0
        %2084 = vmatpush1.msra.mxu0 0.0
        %2085 = vmatprep.subr.mxu0 0.0
        %2086 = vmatpush1.msra.mxu0 0.0
        %2087 = vmatprep.subr.mxu0 0.0
        %2088 = vmatpush1.msra.mxu0 0.0
        %2089 = vmatprep.subr.mxu0 0.0
        %2090 = vmatpush1.msra.mxu0 0.0
        %2091 = vmatprep.subr.mxu0 0.0
        %2092 = vmatpush1.msra.mxu0 0.0
        %2093 = vmatprep.subr.mxu0 0.0
        %2094 = vmatpush1.msra.mxu0 0.0
        %2095 = vmatprep.subr.mxu0 0.0
        %2096 = vmatpush1.msra.mxu0 %v2060
        %2097 = vmatprep.subr.mxu0 0.0
        %2098 = vmatpush1.msra.mxu0 %v2059
        %2099 = vmatprep.subr.mxu0 0.0
        %2100 = vmatpush2.msra.mxu0 0.0
        %2101 = vmatprep.subr.mxu0 0.0
        %2102 = vmatpush2.msra.mxu0 0.0
        %2103 = vmatprep.subr.mxu0 0.0
        %2104 = vmatpush2.msra.mxu0 0.0
        %2105 = vmatprep.subr.mxu0 0.0
        %2106 = vmatpush2.msra.mxu0 0.0
        %2107 = vmatprep.subr.mxu0 0.0
        %2108 = vmatpush2.msra.mxu0 0.0
        %2109 = vmatprep.subr.mxu0 0.0
        %2110 = vmatpush2.msra.mxu0 0.0
        %2111 = vmatprep.subr.mxu0 0.0
        %2112 = vmatpush2.msra.mxu0 0.0
        %2113 = vmatprep.subr.mxu0 0.0
        %2114 = vmatpush2.msra.mxu0 0.0
        %2115 = vmatprep.subr.mxu0 0.0
        %2116 = vmatpush2.msra.mxu0 0.0
        %2117 = vmatprep.subr.mxu0 0.0
        %2118 = vmatpush2.msra.mxu0 0.0
        %2119 = vmatprep.subr.mxu0 0.0
        %2120 = vmatpush2.msra.mxu0 0.0
        %2121 = vmatprep.subr.mxu0 0.0
        %2122 = vmatpush2.msra.mxu0 0.0
        %2123 = vmatprep.subr.mxu0 0.0
        %2124 = vmatpush2.msra.mxu0 0.0
        %2125 = vmatprep.subr.mxu0 0.0
        %2126 = vmatpush2.msra.mxu0 0.0
        %2127 = vmatprep.subr.mxu0 0.0
        %2128 = vmatpush2.msra.mxu0 0.0
        %2129 = vmatprep.subr.mxu0 0.0
        %2130 = vmatpush2.msra.mxu0 0.0
        %2131 = vmatprep.mubr.f32.mxu0 0.0
        %2132 = vmatmul.mubr.f32.gmra.mxu0 %v2065
        %v2133 = vpop.f32.mrf.mxu0
        %v2134 = vadd.f32 %v2062, %v2133
        %v2135 = vpop.f32.mrf.mxu0
        %2136 = vdwg.mxu0
        %vm2137 = vcmask 3072
        %2138 = vst.msk [vmem:[%s499] sm:$0xf] %vm2137, %v2134
        %p2139 = scmp.lt.s32.totalorder %s22, 1
        %s2140 = scalar_select %p2139, %s22, 1
        %s2141 = smul.addr %s2140, 4
        %s2142 = scalar_lea.vmem %s11, %s2141
        // Predicated region
        $region88: #{neuralnet_forward.1} parent=82 // pred_check
          %p2143 = pneg %p276
        $region89: #{neuralnet_forward.1} parent=82 // pred_check_branch
          %2145 = sbr.rel (%p2143) target = $region91
        $region90: #{neuralnet_forward.1} parent=82 // pred_region
          _
        $region91: #{neuralnet_forward.1} parent=82 // pred_fallthru
          _
      $region83: #{neuralnet_forward.1} parent=5 // pred_fallthru
        _
      %p2146 = scmp.le.s32.totalorder 2, %s17
      // Predicated region
      $region92: #{neuralnet_forward.1} parent=5 // pred_check
        %p2147 = pneg %p2146
      $region93: #{neuralnet_forward.1} parent=5 // pred_check_branch
        %2149 = sbr.rel (%p2147) target = $region95
      $region94: #{neuralnet_forward.1} parent=5 // pred_region
        %s2150 = ssub.s32 %s17, 2
        // Predicated region
        $region96: #{neuralnet_forward.1} parent=94 // pred_check
          %p2151 = pneg %p282
        $region97: #{neuralnet_forward.1} parent=94 // pred_check_branch
          %2153 = sbr.rel (%p2151) target = $region99
        $region98: #{neuralnet_forward.1} parent=94 // pred_region
          %p2154 = scmp.lt.s32.totalorder %s23, 1
          %s2155 = scalar_select %p2154, %s23, 1
          %s2156 = smul.addr %s2155, 4
          %s2157 = scalar_lea.vmem %s11, %s2156
        $region99: #{neuralnet_forward.1} parent=94 // pred_fallthru
          _
      $region95: #{neuralnet_forward.1} parent=5 // pred_fallthru
        _
    $region6: #{neuralnet_forward.1} parent=1 // loop_footer
      %s21 = sadd.s32 1, %s17
    $region7: #{neuralnet_forward.1} parent=1 // loop_footer_branch
      %16 = sbr.rel target = $region3
    $region8: #{neuralnet_forward.1} parent=1 // loop_exit
      _

</llo_original>
